<compile_context>
chip_gen: v7x
topology: tpu7x:2x2x1
jax: 0.10.0
libtpu: 0.0.40
codegen_flags: <defaults>
</compile_context>

<pallas_src>
import math

import jax
import jax.numpy as jnp
from jax.experimental import pallas as pl
from jax.experimental.pallas import tpu as pltpu

# ---------------- small synthetic config ----------------
VOCAB = 64
MAX_POS = 16
TYPE_VOCAB = 2
HIDDEN = 32
N_HEADS = 4
HEAD_DIM = HIDDEN // N_HEADS
FFN = 64
N_LAYERS = 2
EMBED_DIM = 16
EMBED_PAD = 128          # lane-dense padded projection width (sliced outside)
LN_EPS = 1e-12

_TRANS_B = (((1,), (1,)), ((), ()))   # dot_general: contract dim 1 of both (q @ k^T)


# ---------------- shared math helpers (used by kernel AND reference) --------
def _layernorm_f32(x, g, b):
    x = x.astype(jnp.float32)
    mu = jnp.mean(x, axis=-1, keepdims=True)
    var = jnp.mean(jnp.square(x - mu), axis=-1, keepdims=True)
    return (x - mu) * jax.lax.rsqrt(var + LN_EPS) * g + b


def _gelu_tanh(x):
    # TODO(synk): HF BertModel default is exact (erf) GELU; tanh approximation
    # is used self-consistently in both the kernel and the reference.
    c = math.sqrt(2.0 / math.pi)
    return 0.5 * x * (1.0 + jnp.tanh(c * (x + 0.044715 * x * x * x)))


def _mm_bf16(a, b):
    # bf16 MXU operands, f32 accumulation (mirrored by the Pallas kernel).
    return jnp.dot(a.astype(jnp.bfloat16), b.astype(jnp.bfloat16),
                   preferred_element_type=jnp.float32)


# ---------------- fused encoder kernel ----------------
def _encoder_kernel(
    emb_ref, embg_ref, embb_ref, kbias_ref, pool_ref,
    wqkv_ref, bqkv_ref, wo_ref, bo_ref, ln1g_ref, ln1b_ref,
    wi_ref, bi_ref, wo2_ref, bo2_ref, ln2g_ref, ln2b_ref,
    projw_ref,
    out_ref,
    x_ref,                                   # VMEM scratch: (S, H) f32 hidden state
):
    layer = pl.program_id(1)

    # ---- layer 0: embedding LayerNorm into the resident VMEM state --------
    @pl.when(layer == 0)
    def _():
        x_ref[...] = _layernorm_f32(emb_ref[...], embg_ref[...], embb_ref[...])

    x = x_ref[...]                            # (S, H) float32

    # ---- fused QKV projection: one bf16 matmul, f32 accumulation ----------
    qkv = jnp.dot(x.astype(jnp.bfloat16), wqkv_ref[...],
                  preferred_element_type=jnp.float32) + bqkv_ref[...]   # (S, 3H)

    # ---- attention: heads are static lane slices of the [S, 3H] slab ------
    # The output projection is fused into the head loop (ctx_h @ wo[rows_h]).
    scale = 1.0 / math.sqrt(HEAD_DIM)
    kbias = kbias_ref[...]                    # (1, S) additive key-mask bias
    attn = jnp.zeros_like(x)
    for h in range(N_HEADS):
        lo = h * HEAD_DIM
        q_h = qkv[:, lo:lo + HEAD_DIM]                                   # (S, dh)
        k_h = qkv[:, HIDDEN + lo:HIDDEN + lo + HEAD_DIM]
        v_h = qkv[:, 2 * HIDDEN + lo:2 * HIDDEN + lo + HEAD_DIM]
        # scores in f32 (softmax-sensitive), q @ k^T without explicit transpose
        s = jax.lax.dot_general(q_h, k_h, _TRANS_B,
                                preferred_element_type=jnp.float32) * scale
        s = s + kbias                                                    # (S, S)
        s = s - jnp.max(s, axis=-1, keepdims=True)
        p = jnp.exp(s)
        p = p * pl.reciprocal(jnp.sum(p, axis=-1, keepdims=True), approx=True)
        ctx_h = jnp.dot(p.astype(jnp.bfloat16), v_h.astype(jnp.bfloat16),
                        preferred_element_type=jnp.float32)              # (S, dh)
        attn = attn + jnp.dot(ctx_h.astype(jnp.bfloat16),
                              wo_ref[lo:lo + HEAD_DIM, :],
                              preferred_element_type=jnp.float32)        # (S, H)
    attn = attn + bo_ref[...]

    # ---- residual + LayerNorm (fused) --------------------------------------
    x = _layernorm_f32(attn + x, ln1g_ref[...], ln1b_ref[...])

    # ---- FFN: GELU(x@Wi+bi) @ Wo2 + bo2, residual + LayerNorm (fused) ------
    inter = jnp.dot(x.astype(jnp.bfloat16), wi_ref[...],
                    preferred_element_type=jnp.float32) + bi_ref[...]
    inter = _gelu_tanh(inter)
    ffn = jnp.dot(inter.astype(jnp.bfloat16), wo2_ref[...],
                  preferred_element_type=jnp.float32) + bo2_ref[...]
    x = _layernorm_f32(ffn + x, ln2g_ref[...], ln2b_ref[...])

    x_ref[...] = x                            # carry state to the next layer

    # ---- last layer: project all rows, then masked-mean pool (fused head) --
    @pl.when(layer == pl.num_programs(1) - 1)
    def _():
        proj_rows = jnp.dot(x.astype(jnp.bfloat16), projw_ref[...],
                            preferred_element_type=jnp.float32)          # (S, E_PAD)
        pooled = jnp.sum(proj_rows * pool_ref[...], axis=0, keepdims=True)  # (1, E_PAD)
        out_ref[...] = pooled[None]                                       # (1,1,E_PAD)


# ---------------- parameters ----------------
def init_params(key):
    keys = iter(jax.random.split(key, 256))

    def nrm(shape, std=0.02):
        return (std * jax.random.normal(next(keys), shape)).astype(jnp.float32)

    zeros = lambda *s: jnp.zeros(s, jnp.float32)
    ones = lambda *s: jnp.ones(s, jnp.float32)

    params = {
        "word_emb": nrm((VOCAB, HIDDEN)),
        "pos_emb": nrm((MAX_POS, HIDDEN)),
        "type_emb": nrm((TYPE_VOCAB, HIDDEN)),
        "emb_ln_g": ones(HIDDEN), "emb_ln_b": zeros(HIDDEN),
        "layers": [],
        # ThemoTextModel.reset_parameters: projection ~ N(0, hidden_size ** -0.5)
        "proj_w": nrm((EMBED_DIM, HIDDEN), std=HIDDEN ** (-0.5)),
    }
    for _ in range(N_LAYERS):
        params["layers"].append({
            "wq": nrm((HIDDEN, HIDDEN)), "bq": zeros(HIDDEN),
            "wk": nrm((HIDDEN, HIDDEN)), "bk": zeros(HIDDEN),
            "wv": nrm((HIDDEN, HIDDEN)), "bv": zeros(HIDDEN),
            "wo": nrm((HIDDEN, HIDDEN)), "bo": zeros(HIDDEN),
            "ln1_g": ones(HIDDEN), "ln1_b": zeros(HIDDEN),
            "wi": nrm((HIDDEN, FFN)), "bi": zeros(FFN),
            "wo2": nrm((FFN, HIDDEN)), "bo2": zeros(HIDDEN),
            "ln2_g": ones(HIDDEN), "ln2_b": zeros(HIDDEN),
        })
    return params


def prepare_pallas_params(params):
    """One-time stacking / bf16 casting / padding (hoisted out of the forward)."""
    layers = params["layers"]
    bf16, f32 = jnp.bfloat16, jnp.float32
    stack_w = lambda k: jnp.stack([lp[k] for lp in layers]).astype(bf16)
    stack_v = lambda k: jnp.stack([lp[k][None, :] for lp in layers]).astype(f32)
    pp = {
        "emb_ln_g": params["emb_ln_g"][None, :].astype(f32),
        "emb_ln_b": params["emb_ln_b"][None, :].astype(f32),
        "wqkv": jnp.stack([jnp.concatenate([lp["wq"], lp["wk"], lp["wv"]], axis=1)
                           for lp in layers]).astype(bf16),               # (L, H, 3H)
        "bqkv": jnp.stack([jnp.concatenate([lp["bq"], lp["bk"], lp["bv"]])[None, :]
                           for lp in layers]).astype(f32),                # (L, 1, 3H)
        "wo": stack_w("wo"), "bo": stack_v("bo"),
        "ln1_g": stack_v("ln1_g"), "ln1_b": stack_v("ln1_b"),
        "wi": stack_w("wi"), "bi": stack_v("bi"),
        "wo2": stack_w("wo2"), "bo2": stack_v("bo2"),
        "ln2_g": stack_v("ln2_g"), "ln2_b": stack_v("ln2_b"),
    }
    # bias-free projection, padded to a lane-dense 128-wide output
    proj_p = jnp.zeros((HIDDEN, EMBED_PAD), f32).at[:, :EMBED_DIM].set(params["proj_w"].T)
    pp["proj_w"] = proj_p.astype(bf16)
    return pp


# ---------------- fused Pallas forward ----------------
def themo_text_forward_pallas(params, pp, input_ids, attention_mask):
    B, S = input_ids.shape
    mask_f = attention_mask.astype(jnp.float32)

    # embedding lookups (token/pos/type gathers) stay in plain JAX glue
    pos_ids = jnp.arange(S)
    type_ids = jnp.zeros((B, S), jnp.int32)
    emb = (params["word_emb"][input_ids]
           + params["pos_emb"][pos_ids][None, :, :]
           + params["type_emb"][type_ids]).astype(jnp.float32)            # (B, S, H)

    key_bias = ((mask_f - 1.0) * 1e9).reshape(B, 1, S)                    # 0 / -1e9
    # masked-mean pooling folded into per-token weights mask/sum(mask).
    # TODO(synk): an all-zero attention_mask row yields NaN, matching the
    # PyTorch reference semantics.
    pool_w = (mask_f / jnp.sum(mask_f, axis=1, keepdims=True)).reshape(B, S, 1)

    def bspec(shape):   # per-batch block (leading batch dim squeezed)
        return pl.BlockSpec((None,) + shape, lambda b, l: (b, 0, 0))

    def lspec(shape):   # per-layer stacked weights (leading layer dim squeezed)
        return pl.BlockSpec((None,) + shape, lambda b, l: (l, 0, 0))

    def cspec(shape):   # constant across the whole grid
        return pl.BlockSpec(shape, lambda b, l: (0,) * len(shape))

    out = pl.pallas_call(
        _encoder_kernel,
        out_shape=jax.ShapeDtypeStruct((B, 1, EMBED_PAD), jnp.float32),
        grid=(B, N_LAYERS),
        in_specs=[
            bspec((S, HIDDEN)),                        # emb
            cspec((1, HIDDEN)),                        # emb_ln_g
            cspec((1, HIDDEN)),                        # emb_ln_b
            bspec((1, S)),                             # key mask bias
            bspec((S, 1)),                             # pooling weights
            lspec((HIDDEN, 3 * HIDDEN)),               # wqkv (bf16)
            lspec((1, 3 * HIDDEN)),                    # bqkv
            lspec((HIDDEN, HIDDEN)),                   # wo   (bf16)
            lspec((1, HIDDEN)),                        # bo
            lspec((1, HIDDEN)),                        # ln1_g
            lspec((1, HIDDEN)),                        # ln1_b
            lspec((HIDDEN, FFN)),                      # wi   (bf16)
            lspec((1, FFN)),                           # bi
            lspec((FFN, HIDDEN)),                      # wo2  (bf16)
            lspec((1, HIDDEN)),                        # bo2
            lspec((1, HIDDEN)),                        # ln2_g
            lspec((1, HIDDEN)),                        # ln2_b
            cspec((HIDDEN, EMBED_PAD)),                # padded projection (bf16)
        ],
        out_specs=pl.BlockSpec((1, 1, EMBED_PAD), lambda b, l: (b, 0, 0)),
        scratch_shapes=[pltpu.VMEM((S, HIDDEN), jnp.float32)],
        compiler_params=pltpu.CompilerParams(
            dimension_semantics=("parallel", "arbitrary")),
    )(emb, pp["emb_ln_g"], pp["emb_ln_b"], key_bias, pool_w,
      pp["wqkv"], pp["bqkv"], pp["wo"], pp["bo"], pp["ln1_g"], pp["ln1_b"],
      pp["wi"], pp["bi"], pp["wo2"], pp["bo2"], pp["ln2_g"], pp["ln2_b"],
      pp["proj_w"])

    return out.reshape(B, EMBED_PAD)[:, :EMBED_DIM]


# ---------------- pure-JAX reference (mirrors the kernel's bf16 MXU ops) ----
def themo_text_forward_ref(params, input_ids, attention_mask):
    B, S = input_ids.shape
    mask_f = attention_mask.astype(jnp.float32)
    pos_ids = jnp.arange(S)
    type_ids = jnp.zeros((B, S), jnp.int32)
    emb = (params["word_emb"][input_ids]
           + params["pos_emb"][pos_ids][None, :, :]
           + params["type_emb"][type_ids]).astype(jnp.float32)
    x = _layernorm_f32(emb.reshape(B * S, HIDDEN),
                       params["emb_ln_g"], params["emb_ln_b"])
    bias = (mask_f - 1.0)[:, None, None, :] * 1e9
    scale = 1.0 / math.sqrt(HEAD_DIM)
    for lp in params["layers"]:
        wqkv = jnp.concatenate([lp["wq"], lp["wk"], lp["wv"]], axis=1)
        bqkv = jnp.concatenate([lp["bq"], lp["bk"], lp["bv"]])
        qkv = _mm_bf16(x, wqkv) + bqkv

        def split(i):
            return (qkv[:, i * HIDDEN:(i + 1) * HIDDEN]
                    .reshape(B, S, N_HEADS, HEAD_DIM).transpose(0, 2, 1, 3))

        q, k, v = split(0), split(1), split(2)
        s = jnp.einsum("bhqd,bhkd->bhqk", q, k,
                       preferred_element_type=jnp.float32) * scale + bias
        p = jax.nn.softmax(s, axis=-1)
        ctx = jnp.einsum("bhqk,bhkd->bhqd", p.astype(jnp.bfloat16),
                         v.astype(jnp.bfloat16),
                         preferred_element_type=jnp.float32)
        ctx = ctx.transpose(0, 2, 1, 3).reshape(B * S, HIDDEN)
        x = _layernorm_f32(_mm_bf16(ctx, lp["wo"]) + lp["bo"] + x,
                           lp["ln1_g"], lp["ln1_b"])
        inter = _gelu_tanh(_mm_bf16(x, lp["wi"]) + lp["bi"])
        x = _layernorm_f32(_mm_bf16(inter, lp["wo2"]) + lp["bo2"] + x,
                           lp["ln2_g"], lp["ln2_b"])
    h = x.reshape(B, S, HIDDEN)
    pooled = (h * mask_f[:, :, None]).sum(axis=1) / mask_f.sum(axis=1, keepdims=True)
    return _mm_bf16(pooled, params["proj_w"].T)


# ---------------- main ----------------
if __name__ == "__main__":
    key = jax.random.PRNGKey(0)
    pkey, ikey = jax.random.split(key)
    params = init_params(pkey)
    pparams = prepare_pallas_params(params)

    B, S = 2, 8
    input_ids = jax.random.randint(ikey, (B, S), 0, VOCAB)
    attention_mask = jnp.array([[1, 1, 1, 1, 1, 1, 1, 1],
                                [1, 1, 1, 1, 1, 0, 0, 0]], dtype=jnp.float32)

    out = themo_text_forward_pallas(params, pparams, input_ids, attention_mask)
    out = jax.block_until_ready(out)
    assert out.shape == (B, EMBED_DIM)

    ref = themo_text_forward_ref(params, input_ids, attention_mask)
    # tolerance covers approx-reciprocal softmax normalization and f32
    # accumulation-order differences; bf16 matmul operands are mirrored.
    assert jnp.allclose(out, ref, atol=1e-2, rtol=1e-2), (out, ref)

    print("KERNEL_OK")
</pallas_src>

<mosaic_0001>
module attributes {stable_mosaic.version = 11 : i64} {
  func.func @_encoder_kernel(%arg0: i32, %arg1: i32, %arg2: memref<1x8x32xf32, #tpu.memory_space<vmem>>, %arg3: memref<1x32xf32, #tpu.memory_space<vmem>>, %arg4: memref<1x32xf32, #tpu.memory_space<vmem>>, %arg5: memref<1x1x8xf32, #tpu.memory_space<vmem>>, %arg6: memref<1x8x1xf32, #tpu.memory_space<vmem>>, %arg7: memref<1x32x96xbf16, #tpu.memory_space<vmem>>, %arg8: memref<1x1x96xf32, #tpu.memory_space<vmem>>, %arg9: memref<1x32x32xbf16, #tpu.memory_space<vmem>>, %arg10: memref<1x1x32xf32, #tpu.memory_space<vmem>>, %arg11: memref<1x1x32xf32, #tpu.memory_space<vmem>>, %arg12: memref<1x1x32xf32, #tpu.memory_space<vmem>>, %arg13: memref<1x32x64xbf16, #tpu.memory_space<vmem>>, %arg14: memref<1x1x64xf32, #tpu.memory_space<vmem>>, %arg15: memref<1x64x32xbf16, #tpu.memory_space<vmem>>, %arg16: memref<1x1x32xf32, #tpu.memory_space<vmem>>, %arg17: memref<1x1x32xf32, #tpu.memory_space<vmem>>, %arg18: memref<1x1x32xf32, #tpu.memory_space<vmem>>, %arg19: memref<32x128xbf16, #tpu.memory_space<vmem>>, %arg20: memref<1x1x128xf32, #tpu.memory_space<vmem>>, %arg21: memref<8x32xf32, #tpu.memory_space<vmem>>) attributes {dimension_semantics = [#tpu.dimension_semantics<parallel>, #tpu.dimension_semantics<arbitrary>], iteration_bounds = array<i64: 2, 2>, scalar_prefetch = 0 : i64, scratch_operands = 1 : i64, tpu.core_type = #tpu.core_type<tc>, window_params = [{transform_indices = @transform_0, window_bounds = array<i64: 1, 8, 32>}, {pipeline_mode = #tpu.pipeline_mode<synchronous>, transform_indices = @transform_1, window_bounds = array<i64: 1, 32>}, {pipeline_mode = #tpu.pipeline_mode<synchronous>, transform_indices = @transform_2, window_bounds = array<i64: 1, 32>}, {transform_indices = @transform_3, window_bounds = array<i64: 1, 1, 8>}, {transform_indices = @transform_4, window_bounds = array<i64: 1, 8, 1>}, {transform_indices = @transform_5, window_bounds = array<i64: 1, 32, 96>}, {transform_indices = @transform_6, window_bounds = array<i64: 1, 1, 96>}, {transform_indices = @transform_7, window_bounds = array<i64: 1, 32, 32>}, {transform_indices = @transform_8, window_bounds = array<i64: 1, 1, 32>}, {transform_indices = @transform_9, window_bounds = array<i64: 1, 1, 32>}, {transform_indices = @transform_10, window_bounds = array<i64: 1, 1, 32>}, {transform_indices = @transform_11, window_bounds = array<i64: 1, 32, 64>}, {transform_indices = @transform_12, window_bounds = array<i64: 1, 1, 64>}, {transform_indices = @transform_13, window_bounds = array<i64: 1, 64, 32>}, {transform_indices = @transform_14, window_bounds = array<i64: 1, 1, 32>}, {transform_indices = @transform_15, window_bounds = array<i64: 1, 1, 32>}, {transform_indices = @transform_16, window_bounds = array<i64: 1, 1, 32>}, {pipeline_mode = #tpu.pipeline_mode<synchronous>, transform_indices = @transform_17, window_bounds = array<i64: 32, 128>}, {transform_indices = @transform_18, window_bounds = array<i64: 1, 1, 128>}]} {
    %c0_i32 = arith.constant 0 : i32
    %0 = arith.cmpi eq, %arg1, %c0_i32 : i32
    %1 = arith.extui %0 : i1 to i32
    %c0_i32_0 = arith.constant 0 : i32
    %2 = arith.cmpi ne, %1, %c0_i32_0 : i32
    scf.if %2 {
      %c0_91 = arith.constant 0 : index
      %c0_92 = arith.constant 0 : index
      %c0_93 = arith.constant 0 : index
      %210 = vector.load %arg2[%c0_91, %c0_92, %c0_93] : memref<1x8x32xf32, #tpu.memory_space<vmem>>, vector<1x8x32xf32>
      %211 = vector.shape_cast %210 : vector<1x8x32xf32> to vector<8x32xf32>
      %c0_94 = arith.constant 0 : index
      %c0_95 = arith.constant 0 : index
      %212 = vector.load %arg3[%c0_94, %c0_95] : memref<1x32xf32, #tpu.memory_space<vmem>>, vector<1x32xf32>
      %c0_96 = arith.constant 0 : index
      %c0_97 = arith.constant 0 : index
      %213 = vector.load %arg4[%c0_96, %c0_97] : memref<1x32xf32, #tpu.memory_space<vmem>>, vector<1x32xf32>
      %cst_98 = arith.constant dense<0.000000e+00> : vector<8xf32>
      %214 = vector.multi_reduction <add>, %211, %cst_98 [1] : vector<8x32xf32> to vector<8xf32>
      %215 = vector.shape_cast %214 : vector<8xf32> to vector<8x1xf32>
      %cst_99 = arith.constant 3.200000e+01 : f32
      %216 = vector.broadcast %cst_99 : f32 to vector<8x1xf32>
      %217 = arith.divf %215, %216 : vector<8x1xf32>
      %218 = vector.broadcast %217 : vector<8x1xf32> to vector<8x32xf32>
      %219 = arith.subf %211, %218 : vector<8x32xf32>
      %220 = arith.mulf %219, %219 : vector<8x32xf32>
      %cst_100 = arith.constant dense<0.000000e+00> : vector<8xf32>
      %221 = vector.multi_reduction <add>, %220, %cst_100 [1] : vector<8x32xf32> to vector<8xf32>
      %222 = vector.shape_cast %221 : vector<8xf32> to vector<8x1xf32>
      %cst_101 = arith.constant 3.200000e+01 : f32
      %223 = vector.broadcast %cst_101 : f32 to vector<8x1xf32>
      %224 = arith.divf %222, %223 : vector<8x1xf32>
      %225 = vector.broadcast %217 : vector<8x1xf32> to vector<8x32xf32>
      %226 = arith.subf %211, %225 : vector<8x32xf32>
      %cst_102 = arith.constant 9.99999996E-13 : f32
      %227 = vector.broadcast %cst_102 : f32 to vector<8x1xf32>
      %228 = arith.addf %224, %227 : vector<8x1xf32>
      %229 = math.rsqrt %228 : vector<8x1xf32>
      %230 = vector.broadcast %229 : vector<8x1xf32> to vector<8x32xf32>
      %231 = arith.mulf %226, %230 : vector<8x32xf32>
      %232 = vector.broadcast %212 : vector<1x32xf32> to vector<8x32xf32>
      %233 = arith.mulf %231, %232 : vector<8x32xf32>
      %234 = vector.broadcast %213 : vector<1x32xf32> to vector<8x32xf32>
      %235 = arith.addf %233, %234 : vector<8x32xf32>
      %c0_103 = arith.constant 0 : index
      %c0_104 = arith.constant 0 : index
      %236 = vector.load %arg21[%c0_103, %c0_104] : memref<8x32xf32, #tpu.memory_space<vmem>>, vector<8x32xf32>
      tpu.vector_store %arg21[%c0_103, %c0_104], %235 {strides = array<i32>} : memref<8x32xf32, #tpu.memory_space<vmem>>, vector<8x32xf32>,
    } else {
    }
    %c0 = arith.constant 0 : index
    %c0_1 = arith.constant 0 : index
    %3 = vector.load %arg21[%c0, %c0_1] : memref<8x32xf32, #tpu.memory_space<vmem>>, vector<8x32xf32>
    %4 = arith.truncf %3 : vector<8x32xf32> to vector<8x32xbf16>
    %c0_2 = arith.constant 0 : index
    %c0_3 = arith.constant 0 : index
    %c0_4 = arith.constant 0 : index
    %5 = vector.load %arg7[%c0_2, %c0_3, %c0_4] : memref<1x32x96xbf16, #tpu.memory_space<vmem>>, vector<1x32x96xbf16>
    %6 = vector.shape_cast %5 : vector<1x32x96xbf16> to vector<32x96xbf16>
    %cst = arith.constant dense<0.000000e+00> : vector<8x96xf32>
    %7 = tpu.matmul %4, %6, %cst {dimension_numbers = #tpu.dot_dimension_numbers<[1], [0], [0], [1], [0, 0, 1, 1], [], []>} : vector<8x32xbf16>, vector<32x96xbf16>, vector<8x96xf32> -> vector<8x96xf32>
    %c0_5 = arith.constant 0 : index
    %c0_6 = arith.constant 0 : index
    %c0_7 = arith.constant 0 : index
    %8 = vector.load %arg8[%c0_5, %c0_6, %c0_7] : memref<1x1x96xf32, #tpu.memory_space<vmem>>, vector<1x1x96xf32>
    %9 = vector.shape_cast %8 : vector<1x1x96xf32> to vector<1x96xf32>
    %10 = vector.broadcast %9 : vector<1x96xf32> to vector<8x96xf32>
    %11 = arith.addf %7, %10 : vector<8x96xf32>
    %c0_8 = arith.constant 0 : index
    %c0_9 = arith.constant 0 : index
    %c0_10 = arith.constant 0 : index
    %12 = vector.load %arg5[%c0_8, %c0_9, %c0_10] : memref<1x1x8xf32, #tpu.memory_space<vmem>>, vector<1x1x8xf32>
    %13 = vector.shape_cast %12 : vector<1x1x8xf32> to vector<1x8xf32>
    %cst_11 = arith.constant 0.000000e+00 : f32
    %14 = vector.broadcast %cst_11 : f32 to vector<8x32xf32>
    %15 = vector.extract_strided_slice %11 {offsets = [0, 0], sizes = [8, 8], strides = [1, 1]} : vector<8x96xf32> to vector<8x8xf32>
    %16 = vector.extract_strided_slice %11 {offsets = [0, 32], sizes = [8, 8], strides = [1, 1]} : vector<8x96xf32> to vector<8x8xf32>
    %17 = vector.extract_strided_slice %11 {offsets = [0, 64], sizes = [8, 8], strides = [1, 1]} : vector<8x96xf32> to vector<8x8xf32>
    %cst_12 = arith.constant dense<0.000000e+00> : vector<8x8xf32>
    %18 = tpu.matmul %15, %16, %cst_12 {dimension_numbers = #tpu.dot_dimension_numbers<[1], [1], [0], [0], [0, 0, 1, 0], [], []>} : vector<8x8xf32>, vector<8x8xf32>, vector<8x8xf32> -> vector<8x8xf32>
    %cst_13 = arith.constant 0.353553385 : f32
    %19 = vector.broadcast %cst_13 : f32 to vector<8x8xf32>
    %20 = arith.mulf %18, %19 : vector<8x8xf32>
    %21 = vector.broadcast %13 : vector<1x8xf32> to vector<8x8xf32>
    %22 = arith.addf %20, %21 : vector<8x8xf32>
    %cst_14 = arith.constant dense<0xFF800000> : vector<8xf32>
    %23 = vector.multi_reduction <maximumf>, %22, %cst_14 [1] : vector<8x8xf32> to vector<8xf32>
    %24 = vector.shape_cast %23 : vector<8xf32> to vector<8x1xf32>
    %25 = vector.broadcast %24 : vector<8x1xf32> to vector<8x8xf32>
    %26 = arith.subf %22, %25 : vector<8x8xf32>
    %27 = math.exp %26 : vector<8x8xf32>
    %cst_15 = arith.constant dense<0.000000e+00> : vector<8xf32>
    %28 = vector.multi_reduction <add>, %27, %cst_15 [1] : vector<8x8xf32> to vector<8xf32>
    %29 = vector.shape_cast %28 : vector<8xf32> to vector<8x1xf32>
    %30 = tpu.reciprocal %29 {approx = true} : vector<8x1xf32> -> vector<8x1xf32>
    %31 = vector.broadcast %30 : vector<8x1xf32> to vector<8x8xf32>
    %32 = arith.mulf %27, %31 : vector<8x8xf32>
    %33 = arith.truncf %32 : vector<8x8xf32> to vector<8x8xbf16>
    %34 = arith.truncf %17 : vector<8x8xf32> to vector<8x8xbf16>
    %cst_16 = arith.constant dense<0.000000e+00> : vector<8x8xf32>
    %35 = tpu.matmul %33, %34, %cst_16 {dimension_numbers = #tpu.dot_dimension_numbers<[1], [0], [0], [1], [0, 0, 1, 1], [], []>} : vector<8x8xbf16>, vector<8x8xbf16>, vector<8x8xf32> -> vector<8x8xf32>
    %36 = arith.truncf %35 : vector<8x8xf32> to vector<8x8xbf16>
    %c0_17 = arith.constant 0 : index
    %c0_18 = arith.constant 0 : index
    %c0_19 = arith.constant 0 : index
    %37 = vector.load %arg9[%c0_17, %c0_18, %c0_19] : memref<1x32x32xbf16, #tpu.memory_space<vmem>>, vector<1x8x32xbf16>
    %38 = vector.shape_cast %37 : vector<1x8x32xbf16> to vector<8x32xbf16>
    %cst_20 = arith.constant dense<0.000000e+00> : vector<8x32xf32>
    %39 = tpu.matmul %36, %38, %cst_20 {dimension_numbers = #tpu.dot_dimension_numbers<[1], [0], [0], [1], [0, 0, 1, 1], [], []>} : vector<8x8xbf16>, vector<8x32xbf16>, vector<8x32xf32> -> vector<8x32xf32>
    %40 = arith.addf %14, %39 : vector<8x32xf32>
    %41 = vector.extract_strided_slice %11 {offsets = [0, 8], sizes = [8, 8], strides = [1, 1]} : vector<8x96xf32> to vector<8x8xf32>
    %42 = vector.extract_strided_slice %11 {offsets = [0, 40], sizes = [8, 8], strides = [1, 1]} : vector<8x96xf32> to vector<8x8xf32>
    %43 = vector.extract_strided_slice %11 {offsets = [0, 72], sizes = [8, 8], strides = [1, 1]} : vector<8x96xf32> to vector<8x8xf32>
    %cst_21 = arith.constant dense<0.000000e+00> : vector<8x8xf32>
    %44 = tpu.matmul %41, %42, %cst_21 {dimension_numbers = #tpu.dot_dimension_numbers<[1], [1], [0], [0], [0, 0, 1, 0], [], []>} : vector<8x8xf32>, vector<8x8xf32>, vector<8x8xf32> -> vector<8x8xf32>
    %cst_22 = arith.constant 0.353553385 : f32
    %45 = vector.broadcast %cst_22 : f32 to vector<8x8xf32>
    %46 = arith.mulf %44, %45 : vector<8x8xf32>
    %47 = vector.broadcast %13 : vector<1x8xf32> to vector<8x8xf32>
    %48 = arith.addf %46, %47 : vector<8x8xf32>
    %cst_23 = arith.constant dense<0xFF800000> : vector<8xf32>
    %49 = vector.multi_reduction <maximumf>, %48, %cst_23 [1] : vector<8x8xf32> to vector<8xf32>
    %50 = vector.shape_cast %49 : vector<8xf32> to vector<8x1xf32>
    %51 = vector.broadcast %50 : vector<8x1xf32> to vector<8x8xf32>
    %52 = arith.subf %48, %51 : vector<8x8xf32>
    %53 = math.exp %52 : vector<8x8xf32>
    %cst_24 = arith.constant dense<0.000000e+00> : vector<8xf32>
    %54 = vector.multi_reduction <add>, %53, %cst_24 [1] : vector<8x8xf32> to vector<8xf32>
    %55 = vector.shape_cast %54 : vector<8xf32> to vector<8x1xf32>
    %56 = tpu.reciprocal %55 {approx = true} : vector<8x1xf32> -> vector<8x1xf32>
    %57 = vector.broadcast %56 : vector<8x1xf32> to vector<8x8xf32>
    %58 = arith.mulf %53, %57 : vector<8x8xf32>
    %59 = arith.truncf %58 : vector<8x8xf32> to vector<8x8xbf16>
    %60 = arith.truncf %43 : vector<8x8xf32> to vector<8x8xbf16>
    %cst_25 = arith.constant dense<0.000000e+00> : vector<8x8xf32>
    %61 = tpu.matmul %59, %60, %cst_25 {dimension_numbers = #tpu.dot_dimension_numbers<[1], [0], [0], [1], [0, 0, 1, 1], [], []>} : vector<8x8xbf16>, vector<8x8xbf16>, vector<8x8xf32> -> vector<8x8xf32>
    %62 = arith.truncf %61 : vector<8x8xf32> to vector<8x8xbf16>
    %c0_26 = arith.constant 0 : index
    %c8 = arith.constant 8 : index
    %c0_27 = arith.constant 0 : index
    %63 = vector.load %arg9[%c0_26, %c8, %c0_27] : memref<1x32x32xbf16, #tpu.memory_space<vmem>>, vector<1x8x32xbf16>
    %64 = vector.shape_cast %63 : vector<1x8x32xbf16> to vector<8x32xbf16>
    %cst_28 = arith.constant dense<0.000000e+00> : vector<8x32xf32>
    %65 = tpu.matmul %62, %64, %cst_28 {dimension_numbers = #tpu.dot_dimension_numbers<[1], [0], [0], [1], [0, 0, 1, 1], [], []>} : vector<8x8xbf16>, vector<8x32xbf16>, vector<8x32xf32> -> vector<8x32xf32>
    %66 = arith.addf %40, %65 : vector<8x32xf32>
    %67 = vector.extract_strided_slice %11 {offsets = [0, 16], sizes = [8, 8], strides = [1, 1]} : vector<8x96xf32> to vector<8x8xf32>
    %68 = vector.extract_strided_slice %11 {offsets = [0, 48], sizes = [8, 8], strides = [1, 1]} : vector<8x96xf32> to vector<8x8xf32>
    %69 = vector.extract_strided_slice %11 {offsets = [0, 80], sizes = [8, 8], strides = [1, 1]} : vector<8x96xf32> to vector<8x8xf32>
    %cst_29 = arith.constant dense<0.000000e+00> : vector<8x8xf32>
    %70 = tpu.matmul %67, %68, %cst_29 {dimension_numbers = #tpu.dot_dimension_numbers<[1], [1], [0], [0], [0, 0, 1, 0], [], []>} : vector<8x8xf32>, vector<8x8xf32>, vector<8x8xf32> -> vector<8x8xf32>
    %cst_30 = arith.constant 0.353553385 : f32
    %71 = vector.broadcast %cst_30 : f32 to vector<8x8xf32>
    %72 = arith.mulf %70, %71 : vector<8x8xf32>
    %73 = vector.broadcast %13 : vector<1x8xf32> to vector<8x8xf32>
    %74 = arith.addf %72, %73 : vector<8x8xf32>
    %cst_31 = arith.constant dense<0xFF800000> : vector<8xf32>
    %75 = vector.multi_reduction <maximumf>, %74, %cst_31 [1] : vector<8x8xf32> to vector<8xf32>
    %76 = vector.shape_cast %75 : vector<8xf32> to vector<8x1xf32>
    %77 = vector.broadcast %76 : vector<8x1xf32> to vector<8x8xf32>
    %78 = arith.subf %74, %77 : vector<8x8xf32>
    %79 = math.exp %78 : vector<8x8xf32>
    %cst_32 = arith.constant dense<0.000000e+00> : vector<8xf32>
    %80 = vector.multi_reduction <add>, %79, %cst_32 [1] : vector<8x8xf32> to vector<8xf32>
    %81 = vector.shape_cast %80 : vector<8xf32> to vector<8x1xf32>
    %82 = tpu.reciprocal %81 {approx = true} : vector<8x1xf32> -> vector<8x1xf32>
    %83 = vector.broadcast %82 : vector<8x1xf32> to vector<8x8xf32>
    %84 = arith.mulf %79, %83 : vector<8x8xf32>
    %85 = arith.truncf %84 : vector<8x8xf32> to vector<8x8xbf16>
    %86 = arith.truncf %69 : vector<8x8xf32> to vector<8x8xbf16>
    %cst_33 = arith.constant dense<0.000000e+00> : vector<8x8xf32>
    %87 = tpu.matmul %85, %86, %cst_33 {dimension_numbers = #tpu.dot_dimension_numbers<[1], [0], [0], [1], [0, 0, 1, 1], [], []>} : vector<8x8xbf16>, vector<8x8xbf16>, vector<8x8xf32> -> vector<8x8xf32>
    %88 = arith.truncf %87 : vector<8x8xf32> to vector<8x8xbf16>
    %c0_34 = arith.constant 0 : index
    %c16 = arith.constant 16 : index
    %c0_35 = arith.constant 0 : index
    %89 = vector.load %arg9[%c0_34, %c16, %c0_35] : memref<1x32x32xbf16, #tpu.memory_space<vmem>>, vector<1x8x32xbf16>
    %90 = vector.shape_cast %89 : vector<1x8x32xbf16> to vector<8x32xbf16>
    %cst_36 = arith.constant dense<0.000000e+00> : vector<8x32xf32>
    %91 = tpu.matmul %88, %90, %cst_36 {dimension_numbers = #tpu.dot_dimension_numbers<[1], [0], [0], [1], [0, 0, 1, 1], [], []>} : vector<8x8xbf16>, vector<8x32xbf16>, vector<8x32xf32> -> vector<8x32xf32>
    %92 = arith.addf %66, %91 : vector<8x32xf32>
    %93 = vector.extract_strided_slice %11 {offsets = [0, 24], sizes = [8, 8], strides = [1, 1]} : vector<8x96xf32> to vector<8x8xf32>
    %94 = vector.extract_strided_slice %11 {offsets = [0, 56], sizes = [8, 8], strides = [1, 1]} : vector<8x96xf32> to vector<8x8xf32>
    %95 = vector.extract_strided_slice %11 {offsets = [0, 88], sizes = [8, 8], strides = [1, 1]} : vector<8x96xf32> to vector<8x8xf32>
    %cst_37 = arith.constant dense<0.000000e+00> : vector<8x8xf32>
    %96 = tpu.matmul %93, %94, %cst_37 {dimension_numbers = #tpu.dot_dimension_numbers<[1], [1], [0], [0], [0, 0, 1, 0], [], []>} : vector<8x8xf32>, vector<8x8xf32>, vector<8x8xf32> -> vector<8x8xf32>
    %cst_38 = arith.constant 0.353553385 : f32
    %97 = vector.broadcast %cst_38 : f32 to vector<8x8xf32>
    %98 = arith.mulf %96, %97 : vector<8x8xf32>
    %99 = vector.broadcast %13 : vector<1x8xf32> to vector<8x8xf32>
    %100 = arith.addf %98, %99 : vector<8x8xf32>
    %cst_39 = arith.constant dense<0xFF800000> : vector<8xf32>
    %101 = vector.multi_reduction <maximumf>, %100, %cst_39 [1] : vector<8x8xf32> to vector<8xf32>
    %102 = vector.shape_cast %101 : vector<8xf32> to vector<8x1xf32>
    %103 = vector.broadcast %102 : vector<8x1xf32> to vector<8x8xf32>
    %104 = arith.subf %100, %103 : vector<8x8xf32>
    %105 = math.exp %104 : vector<8x8xf32>
    %cst_40 = arith.constant dense<0.000000e+00> : vector<8xf32>
    %106 = vector.multi_reduction <add>, %105, %cst_40 [1] : vector<8x8xf32> to vector<8xf32>
    %107 = vector.shape_cast %106 : vector<8xf32> to vector<8x1xf32>
    %108 = tpu.reciprocal %107 {approx = true} : vector<8x1xf32> -> vector<8x1xf32>
    %109 = vector.broadcast %108 : vector<8x1xf32> to vector<8x8xf32>
    %110 = arith.mulf %105, %109 : vector<8x8xf32>
    %111 = arith.truncf %110 : vector<8x8xf32> to vector<8x8xbf16>
    %112 = arith.truncf %95 : vector<8x8xf32> to vector<8x8xbf16>
    %cst_41 = arith.constant dense<0.000000e+00> : vector<8x8xf32>
    %113 = tpu.matmul %111, %112, %cst_41 {dimension_numbers = #tpu.dot_dimension_numbers<[1], [0], [0], [1], [0, 0, 1, 1], [], []>} : vector<8x8xbf16>, vector<8x8xbf16>, vector<8x8xf32> -> vector<8x8xf32>
    %114 = arith.truncf %113 : vector<8x8xf32> to vector<8x8xbf16>
    %c0_42 = arith.constant 0 : index
    %c24 = arith.constant 24 : index
    %c0_43 = arith.constant 0 : index
    %115 = vector.load %arg9[%c0_42, %c24, %c0_43] : memref<1x32x32xbf16, #tpu.memory_space<vmem>>, vector<1x8x32xbf16>
    %116 = vector.shape_cast %115 : vector<1x8x32xbf16> to vector<8x32xbf16>
    %cst_44 = arith.constant dense<0.000000e+00> : vector<8x32xf32>
    %117 = tpu.matmul %114, %116, %cst_44 {dimension_numbers = #tpu.dot_dimension_numbers<[1], [0], [0], [1], [0, 0, 1, 1], [], []>} : vector<8x8xbf16>, vector<8x32xbf16>, vector<8x32xf32> -> vector<8x32xf32>
    %118 = arith.addf %92, %117 : vector<8x32xf32>
    %c0_45 = arith.constant 0 : index
    %c0_46 = arith.constant 0 : index
    %c0_47 = arith.constant 0 : index
    %119 = vector.load %arg10[%c0_45, %c0_46, %c0_47] : memref<1x1x32xf32, #tpu.memory_space<vmem>>, vector<1x1x32xf32>
    %120 = vector.shape_cast %119 : vector<1x1x32xf32> to vector<1x32xf32>
    %121 = vector.broadcast %120 : vector<1x32xf32> to vector<8x32xf32>
    %122 = arith.addf %118, %121 : vector<8x32xf32>
    %123 = arith.addf %122, %3 : vector<8x32xf32>
    %c0_48 = arith.constant 0 : index
    %c0_49 = arith.constant 0 : index
    %c0_50 = arith.constant 0 : index
    %124 = vector.load %arg11[%c0_48, %c0_49, %c0_50] : memref<1x1x32xf32, #tpu.memory_space<vmem>>, vector<1x1x32xf32>
    %125 = vector.shape_cast %124 : vector<1x1x32xf32> to vector<1x32xf32>
    %c0_51 = arith.constant 0 : index
    %c0_52 = arith.constant 0 : index
    %c0_53 = arith.constant 0 : index
    %126 = vector.load %arg12[%c0_51, %c0_52, %c0_53] : memref<1x1x32xf32, #tpu.memory_space<vmem>>, vector<1x1x32xf32>
    %127 = vector.shape_cast %126 : vector<1x1x32xf32> to vector<1x32xf32>
    %cst_54 = arith.constant dense<0.000000e+00> : vector<8xf32>
    %128 = vector.multi_reduction <add>, %123, %cst_54 [1] : vector<8x32xf32> to vector<8xf32>
    %129 = vector.shape_cast %128 : vector<8xf32> to vector<8x1xf32>
    %cst_55 = arith.constant 3.200000e+01 : f32
    %130 = vector.broadcast %cst_55 : f32 to vector<8x1xf32>
    %131 = arith.divf %129, %130 : vector<8x1xf32>
    %132 = vector.broadcast %131 : vector<8x1xf32> to vector<8x32xf32>
    %133 = arith.subf %123, %132 : vector<8x32xf32>
    %134 = arith.mulf %133, %133 : vector<8x32xf32>
    %cst_56 = arith.constant dense<0.000000e+00> : vector<8xf32>
    %135 = vector.multi_reduction <add>, %134, %cst_56 [1] : vector<8x32xf32> to vector<8xf32>
    %136 = vector.shape_cast %135 : vector<8xf32> to vector<8x1xf32>
    %cst_57 = arith.constant 3.200000e+01 : f32
    %137 = vector.broadcast %cst_57 : f32 to vector<8x1xf32>
    %138 = arith.divf %136, %137 : vector<8x1xf32>
    %139 = vector.broadcast %131 : vector<8x1xf32> to vector<8x32xf32>
    %140 = arith.subf %123, %139 : vector<8x32xf32>
    %cst_58 = arith.constant 9.99999996E-13 : f32
    %141 = vector.broadcast %cst_58 : f32 to vector<8x1xf32>
    %142 = arith.addf %138, %141 : vector<8x1xf32>
    %143 = math.rsqrt %142 : vector<8x1xf32>
    %144 = vector.broadcast %143 : vector<8x1xf32> to vector<8x32xf32>
    %145 = arith.mulf %140, %144 : vector<8x32xf32>
    %146 = vector.broadcast %125 : vector<1x32xf32> to vector<8x32xf32>
    %147 = arith.mulf %145, %146 : vector<8x32xf32>
    %148 = vector.broadcast %127 : vector<1x32xf32> to vector<8x32xf32>
    %149 = arith.addf %147, %148 : vector<8x32xf32>
    %150 = arith.truncf %149 : vector<8x32xf32> to vector<8x32xbf16>
    %c0_59 = arith.constant 0 : index
    %c0_60 = arith.constant 0 : index
    %c0_61 = arith.constant 0 : index
    %151 = vector.load %arg13[%c0_59, %c0_60, %c0_61] : memref<1x32x64xbf16, #tpu.memory_space<vmem>>, vector<1x32x64xbf16>
    %152 = vector.shape_cast %151 : vector<1x32x64xbf16> to vector<32x64xbf16>
    %cst_62 = arith.constant dense<0.000000e+00> : vector<8x64xf32>
    %153 = tpu.matmul %150, %152, %cst_62 {dimension_numbers = #tpu.dot_dimension_numbers<[1], [0], [0], [1], [0, 0, 1, 1], [], []>} : vector<8x32xbf16>, vector<32x64xbf16>, vector<8x64xf32> -> vector<8x64xf32>
    %c0_63 = arith.constant 0 : index
    %c0_64 = arith.constant 0 : index
    %c0_65 = arith.constant 0 : index
    %154 = vector.load %arg14[%c0_63, %c0_64, %c0_65] : memref<1x1x64xf32, #tpu.memory_space<vmem>>, vector<1x1x64xf32>
    %155 = vector.shape_cast %154 : vector<1x1x64xf32> to vector<1x64xf32>
    %156 = vector.broadcast %155 : vector<1x64xf32> to vector<8x64xf32>
    %157 = arith.addf %153, %156 : vector<8x64xf32>
    %cst_66 = arith.constant 5.000000e-01 : f32
    %158 = vector.broadcast %cst_66 : f32 to vector<8x64xf32>
    %159 = arith.mulf %158, %157 : vector<8x64xf32>
    %cst_67 = arith.constant 4.471500e-02 : f32
    %160 = vector.broadcast %cst_67 : f32 to vector<8x64xf32>
    %161 = arith.mulf %160, %157 : vector<8x64xf32>
    %162 = arith.mulf %161, %157 : vector<8x64xf32>
    %163 = arith.mulf %162, %157 : vector<8x64xf32>
    %164 = arith.addf %157, %163 : vector<8x64xf32>
    %cst_68 = arith.constant 0.797884583 : f32
    %165 = vector.broadcast %cst_68 : f32 to vector<8x64xf32>
    %166 = arith.mulf %165, %164 : vector<8x64xf32>
    %167 = math.tanh %166 : vector<8x64xf32>
    %cst_69 = arith.constant 1.000000e+00 : f32
    %168 = vector.broadcast %cst_69 : f32 to vector<8x64xf32>
    %169 = arith.addf %168, %167 : vector<8x64xf32>
    %170 = arith.mulf %159, %169 : vector<8x64xf32>
    %171 = arith.truncf %170 : vector<8x64xf32> to vector<8x64xbf16>
    %c0_70 = arith.constant 0 : index
    %c0_71 = arith.constant 0 : index
    %c0_72 = arith.constant 0 : index
    %172 = vector.load %arg15[%c0_70, %c0_71, %c0_72] : memref<1x64x32xbf16, #tpu.memory_space<vmem>>, vector<1x64x32xbf16>
    %173 = vector.shape_cast %172 : vector<1x64x32xbf16> to vector<64x32xbf16>
    %cst_73 = arith.constant dense<0.000000e+00> : vector<8x32xf32>
    %174 = tpu.matmul %171, %173, %cst_73 {dimension_numbers = #tpu.dot_dimension_numbers<[1], [0], [0], [1], [0, 0, 1, 1], [], []>} : vector<8x64xbf16>, vector<64x32xbf16>, vector<8x32xf32> -> vector<8x32xf32>
    %c0_74 = arith.constant 0 : index
    %c0_75 = arith.constant 0 : index
    %c0_76 = arith.constant 0 : index
    %175 = vector.load %arg16[%c0_74, %c0_75, %c0_76] : memref<1x1x32xf32, #tpu.memory_space<vmem>>, vector<1x1x32xf32>
    %176 = vector.shape_cast %175 : vector<1x1x32xf32> to vector<1x32xf32>
    %177 = vector.broadcast %176 : vector<1x32xf32> to vector<8x32xf32>
    %178 = arith.addf %174, %177 : vector<8x32xf32>
    %179 = arith.addf %178, %149 : vector<8x32xf32>
    %c0_77 = arith.constant 0 : index
    %c0_78 = arith.constant 0 : index
    %c0_79 = arith.constant 0 : index
    %180 = vector.load %arg17[%c0_77, %c0_78, %c0_79] : memref<1x1x32xf32, #tpu.memory_space<vmem>>, vector<1x1x32xf32>
    %181 = vector.shape_cast %180 : vector<1x1x32xf32> to vector<1x32xf32>
    %c0_80 = arith.constant 0 : index
    %c0_81 = arith.constant 0 : index
    %c0_82 = arith.constant 0 : index
    %182 = vector.load %arg18[%c0_80, %c0_81, %c0_82] : memref<1x1x32xf32, #tpu.memory_space<vmem>>, vector<1x1x32xf32>
    %183 = vector.shape_cast %182 : vector<1x1x32xf32> to vector<1x32xf32>
    %cst_83 = arith.constant dense<0.000000e+00> : vector<8xf32>
    %184 = vector.multi_reduction <add>, %179, %cst_83 [1] : vector<8x32xf32> to vector<8xf32>
    %185 = vector.shape_cast %184 : vector<8xf32> to vector<8x1xf32>
    %cst_84 = arith.constant 3.200000e+01 : f32
    %186 = vector.broadcast %cst_84 : f32 to vector<8x1xf32>
    %187 = arith.divf %185, %186 : vector<8x1xf32>
    %188 = vector.broadcast %187 : vector<8x1xf32> to vector<8x32xf32>
    %189 = arith.subf %179, %188 : vector<8x32xf32>
    %190 = arith.mulf %189, %189 : vector<8x32xf32>
    %cst_85 = arith.constant dense<0.000000e+00> : vector<8xf32>
    %191 = vector.multi_reduction <add>, %190, %cst_85 [1] : vector<8x32xf32> to vector<8xf32>
    %192 = vector.shape_cast %191 : vector<8xf32> to vector<8x1xf32>
    %cst_86 = arith.constant 3.200000e+01 : f32
    %193 = vector.broadcast %cst_86 : f32 to vector<8x1xf32>
    %194 = arith.divf %192, %193 : vector<8x1xf32>
    %195 = vector.broadcast %187 : vector<8x1xf32> to vector<8x32xf32>
    %196 = arith.subf %179, %195 : vector<8x32xf32>
    %cst_87 = arith.constant 9.99999996E-13 : f32
    %197 = vector.broadcast %cst_87 : f32 to vector<8x1xf32>
    %198 = arith.addf %194, %197 : vector<8x1xf32>
    %199 = math.rsqrt %198 : vector<8x1xf32>
    %200 = vector.broadcast %199 : vector<8x1xf32> to vector<8x32xf32>
    %201 = arith.mulf %196, %200 : vector<8x32xf32>
    %202 = vector.broadcast %181 : vector<1x32xf32> to vector<8x32xf32>
    %203 = arith.mulf %201, %202 : vector<8x32xf32>
    %204 = vector.broadcast %183 : vector<1x32xf32> to vector<8x32xf32>
    %205 = arith.addf %203, %204 : vector<8x32xf32>
    %c0_88 = arith.constant 0 : index
    %c0_89 = arith.constant 0 : index
    %206 = vector.load %arg21[%c0_88, %c0_89] : memref<8x32xf32, #tpu.memory_space<vmem>>, vector<8x32xf32>
    tpu.vector_store %arg21[%c0_88, %c0_89], %205 {strides = array<i32>} : memref<8x32xf32, #tpu.memory_space<vmem>>, vector<8x32xf32>,
    %c1_i32 = arith.constant 1 : i32
    %207 = arith.cmpi eq, %arg1, %c1_i32 : i32
    %208 = arith.extui %207 : i1 to i32
    %c0_i32_90 = arith.constant 0 : i32
    %209 = arith.cmpi ne, %208, %c0_i32_90 : i32
    scf.if %209 {
      %210 = arith.truncf %205 : vector<8x32xf32> to vector<8x32xbf16>
      %c0_91 = arith.constant 0 : index
      %c0_92 = arith.constant 0 : index
      %211 = vector.load %arg19[%c0_91, %c0_92] : memref<32x128xbf16, #tpu.memory_space<vmem>>, vector<32x128xbf16>
      %cst_93 = arith.constant dense<0.000000e+00> : vector<8x128xf32>
      %212 = tpu.matmul %210, %211, %cst_93 {dimension_numbers = #tpu.dot_dimension_numbers<[1], [0], [0], [1], [0, 0, 1, 1], [], []>} : vector<8x32xbf16>, vector<32x128xbf16>, vector<8x128xf32> -> vector<8x128xf32>
      %c0_94 = arith.constant 0 : index
      %c0_95 = arith.constant 0 : index
      %c0_96 = arith.constant 0 : index
      %213 = vector.load %arg6[%c0_94, %c0_95, %c0_96] : memref<1x8x1xf32, #tpu.memory_space<vmem>>, vector<1x8x1xf32>
      %214 = vector.shape_cast %213 : vector<1x8x1xf32> to vector<8x1xf32>
      %215 = vector.broadcast %214 : vector<8x1xf32> to vector<8x128xf32>
      %216 = arith.mulf %212, %215 : vector<8x128xf32>
      %cst_97 = arith.constant dense<0.000000e+00> : vector<128xf32>
      %217 = vector.multi_reduction <add>, %216, %cst_97 [0] : vector<8x128xf32> to vector<128xf32>
      %218 = vector.shape_cast %217 : vector<128xf32> to vector<1x128xf32>
      %219 = vector.shape_cast %218 : vector<1x128xf32> to vector<1x1x128xf32>
      %c0_98 = arith.constant 0 : index
      %c0_99 = arith.constant 0 : index
      %c0_100 = arith.constant 0 : index
      %220 = vector.load %arg20[%c0_98, %c0_99, %c0_100] : memref<1x1x128xf32, #tpu.memory_space<vmem>>, vector<1x1x128xf32>
      tpu.vector_store %arg20[%c0_98, %c0_99, %c0_100], %219 {strides = array<i32>} : memref<1x1x128xf32, #tpu.memory_space<vmem>>, vector<1x1x128xf32>,
    } else {
    }
    return
  }
  func.func @transform_0(%arg0: i32, %arg1: i32) -> (i32, i32, i32) {
    %c0_i32 = arith.constant 0 : i32
    %c0_i32_0 = arith.constant 0 : i32
    %c0_i32_1 = arith.constant 0 : i32
    return %arg0, %c0_i32, %c0_i32_0 : i32, i32, i32
  }
  func.func @transform_1(%arg0: i32, %arg1: i32) -> (i32, i32) {
    %c0_i32 = arith.constant 0 : i32
    %c0_i32_0 = arith.constant 0 : i32
    %c0_i32_1 = arith.constant 0 : i32
    return %c0_i32, %c0_i32_0 : i32, i32
  }
  func.func @transform_2(%arg0: i32, %arg1: i32) -> (i32, i32) {
    %c0_i32 = arith.constant 0 : i32
    %c0_i32_0 = arith.constant 0 : i32
    %c0_i32_1 = arith.constant 0 : i32
    return %c0_i32, %c0_i32_0 : i32, i32
  }
  func.func @transform_3(%arg0: i32, %arg1: i32) -> (i32, i32, i32) {
    %c0_i32 = arith.constant 0 : i32
    %c0_i32_0 = arith.constant 0 : i32
    %c0_i32_1 = arith.constant 0 : i32
    return %arg0, %c0_i32, %c0_i32_0 : i32, i32, i32
  }
  func.func @transform_4(%arg0: i32, %arg1: i32) -> (i32, i32, i32) {
    %c0_i32 = arith.constant 0 : i32
    %c0_i32_0 = arith.constant 0 : i32
    %c0_i32_1 = arith.constant 0 : i32
    return %arg0, %c0_i32, %c0_i32_0 : i32, i32, i32
  }
  func.func @transform_5(%arg0: i32, %arg1: i32) -> (i32, i32, i32) {
    %c0_i32 = arith.constant 0 : i32
    %c0_i32_0 = arith.constant 0 : i32
    %c0_i32_1 = arith.constant 0 : i32
    return %arg1, %c0_i32, %c0_i32_0 : i32, i32, i32
  }
  func.func @transform_6(%arg0: i32, %arg1: i32) -> (i32, i32, i32) {
    %c0_i32 = arith.constant 0 : i32
    %c0_i32_0 = arith.constant 0 : i32
    %c0_i32_1 = arith.constant 0 : i32
    return %arg1, %c0_i32, %c0_i32_0 : i32, i32, i32
  }
  func.func @transform_7(%arg0: i32, %arg1: i32) -> (i32, i32, i32) {
    %c0_i32 = arith.constant 0 : i32
    %c0_i32_0 = arith.constant 0 : i32
    %c0_i32_1 = arith.constant 0 : i32
    return %arg1, %c0_i32, %c0_i32_0 : i32, i32, i32
  }
  func.func @transform_8(%arg0: i32, %arg1: i32) -> (i32, i32, i32) {
    %c0_i32 = arith.constant 0 : i32
    %c0_i32_0 = arith.constant 0 : i32
    %c0_i32_1 = arith.constant 0 : i32
    return %arg1, %c0_i32, %c0_i32_0 : i32, i32, i32
  }
  func.func @transform_9(%arg0: i32, %arg1: i32) -> (i32, i32, i32) {
    %c0_i32 = arith.constant 0 : i32
    %c0_i32_0 = arith.constant 0 : i32
    %c0_i32_1 = arith.constant 0 : i32
    return %arg1, %c0_i32, %c0_i32_0 : i32, i32, i32
  }
  func.func @transform_10(%arg0: i32, %arg1: i32) -> (i32, i32, i32) {
    %c0_i32 = arith.constant 0 : i32
    %c0_i32_0 = arith.constant 0 : i32
    %c0_i32_1 = arith.constant 0 : i32
    return %arg1, %c0_i32, %c0_i32_0 : i32, i32, i32
  }
  func.func @transform_11(%arg0: i32, %arg1: i32) -> (i32, i32, i32) {
    %c0_i32 = arith.constant 0 : i32
    %c0_i32_0 = arith.constant 0 : i32
    %c0_i32_1 = arith.constant 0 : i32
    return %arg1, %c0_i32, %c0_i32_0 : i32, i32, i32
  }
  func.func @transform_12(%arg0: i32, %arg1: i32) -> (i32, i32, i32) {
    %c0_i32 = arith.constant 0 : i32
    %c0_i32_0 = arith.constant 0 : i32
    %c0_i32_1 = arith.constant 0 : i32
    return %arg1, %c0_i32, %c0_i32_0 : i32, i32, i32
  }
  func.func @transform_13(%arg0: i32, %arg1: i32) -> (i32, i32, i32) {
    %c0_i32 = arith.constant 0 : i32
    %c0_i32_0 = arith.constant 0 : i32
    %c0_i32_1 = arith.constant 0 : i32
    return %arg1, %c0_i32, %c0_i32_0 : i32, i32, i32
  }
  func.func @transform_14(%arg0: i32, %arg1: i32) -> (i32, i32, i32) {
    %c0_i32 = arith.constant 0 : i32
    %c0_i32_0 = arith.constant 0 : i32
    %c0_i32_1 = arith.constant 0 : i32
    return %arg1, %c0_i32, %c0_i32_0 : i32, i32, i32
  }
  func.func @transform_15(%arg0: i32, %arg1: i32) -> (i32, i32, i32) {
    %c0_i32 = arith.constant 0 : i32
    %c0_i32_0 = arith.constant 0 : i32
    %c0_i32_1 = arith.constant 0 : i32
    return %arg1, %c0_i32, %c0_i32_0 : i32, i32, i32
  }
  func.func @transform_16(%arg0: i32, %arg1: i32) -> (i32, i32, i32) {
    %c0_i32 = arith.constant 0 : i32
    %c0_i32_0 = arith.constant 0 : i32
    %c0_i32_1 = arith.constant 0 : i32
    return %arg1, %c0_i32, %c0_i32_0 : i32, i32, i32
  }
  func.func @transform_17(%arg0: i32, %arg1: i32) -> (i32, i32) {
    %c0_i32 = arith.constant 0 : i32
    %c0_i32_0 = arith.constant 0 : i32
    %c0_i32_1 = arith.constant 0 : i32
    return %c0_i32, %c0_i32_0 : i32, i32
  }
  func.func @transform_18(%arg0: i32, %arg1: i32) -> (i32, i32, i32) {
    %c0_i32 = arith.constant 0 : i32
    %c0_i32_0 = arith.constant 0 : i32
    %c0_i32_1 = arith.constant 0 : i32
    return %arg0, %c0_i32, %c0_i32_0 : i32, i32, i32
  }
}

</mosaic_0001>

<llo_original>
// kernel: tpu_custom_call.1
$region0: #{tpu_custom_call.1}
  #allocation0 [shape = 'u32[]', space=smem, size = 0x4, offset = 0x4, fixed_abs, tag = 'smem constant byte address 0x4 - core index']
  #allocation1 [shape = 'u32[144,128]{1,0:T(1,128)}', space=vmem, size = 0x12000, scoped, tag = 'internal scratch']
  #allocation2 [shape = 'f32[8,32]{1,0:T(8,128)}', space=vmem, size = 0x1000, scoped, tag = 'scratch operand']
  %s0 = inlined_call_operand.vmem [shape: f32[2,8,32], index: 0, kind: input, shape index: {}]
  %s1 = inlined_call_operand.vmem [shape: f32[1,32], index: 1, kind: input, shape index: {}]
  %s2 = inlined_call_operand.hbm [shape: f32[1,32], index: 2, kind: input, shape index: {}]
  %s3 = inlined_call_operand.vmem [shape: f32[2,1,8], index: 3, kind: input, shape index: {}]
  %s4 = inlined_call_operand.vmem [shape: f32[2,8,1], index: 4, kind: input, shape index: {}]
  %s5 = inlined_call_operand.vmem [shape: bf16[2,32,96], index: 5, kind: input, shape index: {}]
  %s6 = inlined_call_operand.hbm [shape: f32[2,1,96], index: 6, kind: input, shape index: {}]
  %s7 = inlined_call_operand.vmem [shape: bf16[2,32,32], index: 7, kind: input, shape index: {}]
  %s8 = inlined_call_operand.hbm [shape: f32[2,1,32], index: 8, kind: input, shape index: {}]
  %s9 = inlined_call_operand.hbm [shape: f32[2,1,32], index: 9, kind: input, shape index: {}]
  %s10 = inlined_call_operand.hbm [shape: f32[2,1,32], index: 10, kind: input, shape index: {}]
  %s11 = inlined_call_operand.vmem [shape: bf16[2,32,64], index: 11, kind: input, shape index: {}]
  %s12 = inlined_call_operand.hbm [shape: f32[2,1,64], index: 12, kind: input, shape index: {}]
  %s13 = inlined_call_operand.vmem [shape: bf16[2,64,32], index: 13, kind: input, shape index: {}]
  %s14 = inlined_call_operand.vmem [shape: f32[2,1,32], index: 14, kind: input, shape index: {}]
  %s15 = inlined_call_operand.vmem [shape: f32[2,1,32], index: 15, kind: input, shape index: {}]
  %s16 = inlined_call_operand.vmem [shape: f32[2,1,32], index: 16, kind: input, shape index: {}]
  %s17 = inlined_call_operand.vmem [shape: bf16[32,128], index: 17, kind: input, shape index: {}]
  %s18 = inlined_call_operand.hbm [shape: f32[2,1,128], index: 18, kind: output, shape index: {}]
  %s19 = sld [smem:[#allocation0]]
  $region137: #{tpu_custom_call.1} parent=0
    _
  %s21 = ssub.s32 1, %s19
  %s22 = scalar_select 0, %s21, %s19
  $region1: #{tpu_custom_call.1} parent=0
    #allocation3 [shape = 'u8[512]{0}', space=vmem, size = 0x400, scoped, tag = 'input window, operand 2, single buffered']
    #allocation4 [shape = 's32[2]{0}', space=sflag, size = 0x8, scoped, tag = 'scoped memory for tpu_custom_call.1']
    #allocation5 [shape = 's32[2]{0}', space=sflag, size = 0x8, scoped, tag = 'scoped memory for tpu_custom_call.1']
    #allocation6 [shape = 'u8[1024]{0}', space=vmem, size = 0x400, scoped, tag = 'input window, operand 6']
    #allocation7 [shape = 's32[2]{0}', space=sflag, size = 0x8, scoped, tag = 'scoped memory for tpu_custom_call.1']
    #allocation8 [shape = 'u8[1024]{0}', space=vmem, size = 0x400, scoped, tag = 'input window, operand 8']
    #allocation9 [shape = 'u8[1024]{0}', space=vmem, size = 0x400, scoped, tag = 'input window, operand 9']
    #allocation10 [shape = 's32[2]{0}', space=sflag, size = 0x8, scoped, tag = 'scoped memory for tpu_custom_call.1']
    #allocation11 [shape = 'u8[1024]{0}', space=vmem, size = 0x400, scoped, tag = 'input window, operand 10']
    #allocation12 [shape = 'u8[1024]{0}', space=vmem, size = 0x400, scoped, tag = 'input window, operand 12']
    #allocation13 [shape = 's32[2]{0}', space=sflag, size = 0x8, scoped, tag = 'scoped memory for tpu_custom_call.1']
    #allocation14 [shape = 'u8[1024]{0}', space=vmem, size = 0x400, scoped, tag = 'output window, operand 0']
    %23 = vsyncpa [#allocation4], 0
    %24 = vsyncpa [#allocation7], 0
    %s25 = scalar_lea.sflag [#allocation7], 1
    %26 = vsyncpa %s25, 0
    %27 = vsyncpa [#allocation10], 0
    %s28 = scalar_lea.sflag [#allocation10], 1
    %29 = vsyncpa %s28, 0
    %30 = vsyncpa [#allocation13], 0
    %s31 = scalar_lea.sflag [#allocation13], 1
    %32 = vsyncpa %s31, 0
    %33 = vsyncpa [#allocation5], 0
    %s34 = scalar_lea.sflag [#allocation5], 1
    %35 = vsyncpa %s34, 0
    loop: start=0, step=1, limit=6
    $region2: #{tpu_custom_call.1} parent=1 // loop_pre_header
      _
    $region3: #{tpu_custom_call.1} parent=1 // loop_header
      %s37 = sphi 0, %s41
      %p38 = scmp.ge.s32.totalorder %s37, 6
      %s44 = sphi 0, %s56
      %s45 = sphi 0, %s52
      %s46 = sphi 0, %s44
      %s47 = sphi 0, %s45
      %s48 = sphi 0, %s46
      %s49 = sphi 0, %s47
      %s59 = sphi 0, %s61
      %s62 = sphi 0, %s59
      %s63 = sphi 0, %s62
      %s79 = sphi 0, %s63
      %s83 = sphi 0, %s83
      %s85 = sphi 0, %s83
      %s86 = sphi 0, %s85
      %s100 = sphi 0, %s86
      %s104 = sphi 0, %s104
      %s106 = sphi 0, %s104
      %s107 = sphi 0, %s106
      %s121 = sphi 0, %s107
      %s127 = sphi 0, %s129
      %s130 = sphi 0, %s127
      %s131 = sphi 0, %s130
      %s147 = sphi 0, %s131
      %s153 = sphi 0, %s155
      %s156 = sphi 0, %s153
      %s157 = sphi 0, %s156
      %s173 = sphi 0, %s157
      %s179 = sphi 0, %s181
      %s182 = sphi 0, %s179
      %s183 = sphi 0, %s182
      %s199 = sphi 0, %s183
      %s205 = sphi 0, %s207
      %s208 = sphi 0, %s205
      %s209 = sphi 0, %s208
      %s225 = sphi 0, %s209
      %s231 = sphi 0, %s233
      %s234 = sphi 0, %s231
      %s235 = sphi 0, %s234
      %s251 = sphi 0, %s235
      %s257 = sphi 0, %s259
      %s260 = sphi 0, %s257
      %s261 = sphi 0, %s260
      %s277 = sphi 0, %s261
      %s283 = sphi 0, %s285
      %s286 = sphi 0, %s283
      %s287 = sphi 0, %s286
      %s303 = sphi 0, %s287
      %s309 = sphi 0, %s311
      %s312 = sphi 0, %s309
      %s313 = sphi 0, %s312
      %s329 = sphi 0, %s313
      %s335 = sphi 0, %s337
      %s338 = sphi 0, %s335
      %s339 = sphi 0, %s338
      %s355 = sphi 0, %s339
      %s361 = sphi 0, %s363
      %s364 = sphi 0, %s361
      %s365 = sphi 0, %s364
      %s381 = sphi 0, %s365
      %s387 = sphi 0, %s389
      %s390 = sphi 0, %s387
      %s391 = sphi 0, %s390
      %s407 = sphi 0, %s391
      %s413 = sphi 0, %s415
      %s416 = sphi 0, %s413
      %s417 = sphi 0, %s416
      %s433 = sphi 0, %s417
      %s439 = sphi 0, %s441
      %s442 = sphi 0, %s439
      %s443 = sphi 0, %s442
      %s459 = sphi 0, %s443
      %s465 = sphi 0, %s467
      %s468 = sphi 0, %s465
      %s469 = sphi 0, %s468
      %s485 = sphi 0, %s469
      %s489 = sphi 0, %s489
      %s491 = sphi 0, %s489
      %s492 = sphi 0, %s491
      %s506 = sphi 0, %s492
      %s512 = sphi 0, %s514
      %s515 = sphi 0, %s512
      %s516 = sphi 0, %s515
      %s532 = sphi 0, %s516
    $region4: #{tpu_custom_call.1} parent=1 // loop_header_branch
      %40 = sbr.rel (%p38) target = $region8
    $region5: #{tpu_custom_call.1} parent=1 // loop_body
      %s42 = ssub.s32 %s37, 1
      %s43 = ssub.s32 %s37, 2
      %s50 = sadd.s32 1, %s45
      %p51 = scmp.ge.s32.totalorder %s50, 2
      %s52 = scalar_select %p51, 0, %s50
      %s53 = sadd.s32 1, %s44
      %s54 = scalar_select %p51, %s53, %s44
      %p55 = scmp.ge.s32.totalorder %s54, 2
      %s56 = scalar_select %p55, 0, %s54
      %s57 = ssub.s32 %s44, %s56
      %p58 = scmp.eq.s32.totalorder %s57, 0
      %s60 = sadd.s32 %s59, 1
      %s61 = scalar_select %p58, %s59, %s60
      %p64 = pneg %p58
      %p65 = scmp.eq.s32.totalorder %s37, 3
      %p66 = por %p64, %p65
      %p67 = scmp.ne.s32.totalorder %s59, %s62
      %p68 = scmp.eq.s32.totalorder %s37, 0
      %p69 = por %p67, %p68
      %p70 = scmp.ne.s32.totalorder %s59, %s62
      %p71 = scmp.eq.s32.totalorder %s42, 3
      %p72 = por %p70, %p71
      %p73 = scmp.ne.s32.totalorder %s62, %s63
      %p74 = scmp.eq.s32.totalorder %s42, 0
      %p75 = por %p73, %p74
      %p76 = scmp.ne.s32.totalorder %s62, %s63
      %p77 = scmp.eq.s32.totalorder %s43, 3
      %p78 = por %p76, %p77
      %p80 = scmp.ne.s32.totalorder %s63, %s79
      %p81 = scmp.eq.s32.totalorder %s43, 0
      %p82 = por %p80, %p81
      %s84 = sadd.s32 %s83, 1
      %p87 = scmp.eq.s32.totalorder %s37, 3
      %p88 = scmp.ne.s32.totalorder %s83, %s85
      %p89 = scmp.eq.s32.totalorder %s37, 0
      %p90 = por %p88, %p89
      %p91 = scmp.ne.s32.totalorder %s83, %s85
      %p92 = scmp.eq.s32.totalorder %s42, 3
      %p93 = por %p91, %p92
      %p94 = scmp.ne.s32.totalorder %s85, %s86
      %p95 = scmp.eq.s32.totalorder %s42, 0
      %p96 = por %p94, %p95
      %p97 = scmp.ne.s32.totalorder %s85, %s86
      %p98 = scmp.eq.s32.totalorder %s43, 3
      %p99 = por %p97, %p98
      %p101 = scmp.ne.s32.totalorder %s86, %s100
      %p102 = scmp.eq.s32.totalorder %s43, 0
      %p103 = por %p101, %p102
      %s105 = sadd.s32 %s104, 1
      %p108 = scmp.eq.s32.totalorder %s37, 3
      %p109 = scmp.ne.s32.totalorder %s104, %s106
      %p110 = scmp.eq.s32.totalorder %s37, 0
      %p111 = por %p109, %p110
      %p112 = scmp.ne.s32.totalorder %s104, %s106
      %p113 = scmp.eq.s32.totalorder %s42, 3
      %p114 = por %p112, %p113
      %p115 = scmp.ne.s32.totalorder %s106, %s107
      %p116 = scmp.eq.s32.totalorder %s42, 0
      %p117 = por %p115, %p116
      %p118 = scmp.ne.s32.totalorder %s106, %s107
      %p119 = scmp.eq.s32.totalorder %s43, 3
      %p120 = por %p118, %p119
      %p122 = scmp.ne.s32.totalorder %s107, %s121
      %p123 = scmp.eq.s32.totalorder %s43, 0
      %p124 = por %p122, %p123
      %s125 = ssub.s32 %s44, %s56
      %p126 = scmp.eq.s32.totalorder %s125, 0
      %s128 = sadd.s32 %s127, 1
      %s129 = scalar_select %p126, %s127, %s128
      %p132 = pneg %p126
      %p133 = scmp.eq.s32.totalorder %s37, 3
      %p134 = por %p132, %p133
      %p135 = scmp.ne.s32.totalorder %s127, %s130
      %p136 = scmp.eq.s32.totalorder %s37, 0
      %p137 = por %p135, %p136
      %p138 = scmp.ne.s32.totalorder %s127, %s130
      %p139 = scmp.eq.s32.totalorder %s42, 3
      %p140 = por %p138, %p139
      %p141 = scmp.ne.s32.totalorder %s130, %s131
      %p142 = scmp.eq.s32.totalorder %s42, 0
      %p143 = por %p141, %p142
      %p144 = scmp.ne.s32.totalorder %s130, %s131
      %p145 = scmp.eq.s32.totalorder %s43, 3
      %p146 = por %p144, %p145
      %p148 = scmp.ne.s32.totalorder %s131, %s147
      %p149 = scmp.eq.s32.totalorder %s43, 0
      %p150 = por %p148, %p149
      %s151 = ssub.s32 %s44, %s56
      %p152 = scmp.eq.s32.totalorder %s151, 0
      %s154 = sadd.s32 %s153, 1
      %s155 = scalar_select %p152, %s153, %s154
      %p158 = pneg %p152
      %p159 = scmp.eq.s32.totalorder %s37, 3
      %p160 = por %p158, %p159
      %p161 = scmp.ne.s32.totalorder %s153, %s156
      %p162 = scmp.eq.s32.totalorder %s37, 0
      %p163 = por %p161, %p162
      %p164 = scmp.ne.s32.totalorder %s153, %s156
      %p165 = scmp.eq.s32.totalorder %s42, 3
      %p166 = por %p164, %p165
      %p167 = scmp.ne.s32.totalorder %s156, %s157
      %p168 = scmp.eq.s32.totalorder %s42, 0
      %p169 = por %p167, %p168
      %p170 = scmp.ne.s32.totalorder %s156, %s157
      %p171 = scmp.eq.s32.totalorder %s43, 3
      %p172 = por %p170, %p171
      %p174 = scmp.ne.s32.totalorder %s157, %s173
      %p175 = scmp.eq.s32.totalorder %s43, 0
      %p176 = por %p174, %p175
      %s177 = ssub.s32 %s45, %s52
      %p178 = scmp.eq.s32.totalorder %s177, 0
      %s180 = sadd.s32 %s179, 1
      %s181 = scalar_select %p178, %s179, %s180
      %p184 = pneg %p178
      %p185 = scmp.eq.s32.totalorder %s37, 3
      %p186 = por %p184, %p185
      %p187 = scmp.ne.s32.totalorder %s179, %s182
      %p188 = scmp.eq.s32.totalorder %s37, 0
      %p189 = por %p187, %p188
      %p190 = scmp.ne.s32.totalorder %s179, %s182
      %p191 = scmp.eq.s32.totalorder %s42, 3
      %p192 = por %p190, %p191
      %p193 = scmp.ne.s32.totalorder %s182, %s183
      %p194 = scmp.eq.s32.totalorder %s42, 0
      %p195 = por %p193, %p194
      %p196 = scmp.ne.s32.totalorder %s182, %s183
      %p197 = scmp.eq.s32.totalorder %s43, 3
      %p198 = por %p196, %p197
      %p200 = scmp.ne.s32.totalorder %s183, %s199
      %p201 = scmp.eq.s32.totalorder %s43, 0
      %p202 = por %p200, %p201
      %s203 = ssub.s32 %s45, %s52
      %p204 = scmp.eq.s32.totalorder %s203, 0
      %s206 = sadd.s32 %s205, 1
      %s207 = scalar_select %p204, %s205, %s206
      %p210 = pneg %p204
      %p211 = scmp.eq.s32.totalorder %s37, 3
      %p212 = por %p210, %p211
      %p213 = scmp.ne.s32.totalorder %s205, %s208
      %p214 = scmp.eq.s32.totalorder %s37, 0
      %p215 = por %p213, %p214
      %p216 = scmp.ne.s32.totalorder %s205, %s208
      %p217 = scmp.eq.s32.totalorder %s42, 3
      %p218 = por %p216, %p217
      %p219 = scmp.ne.s32.totalorder %s208, %s209
      %p220 = scmp.eq.s32.totalorder %s42, 0
      %p221 = por %p219, %p220
      %p222 = scmp.ne.s32.totalorder %s208, %s209
      %p223 = scmp.eq.s32.totalorder %s43, 3
      %p224 = por %p222, %p223
      %p226 = scmp.ne.s32.totalorder %s209, %s225
      %p227 = scmp.eq.s32.totalorder %s43, 0
      %p228 = por %p226, %p227
      %s229 = ssub.s32 %s45, %s52
      %p230 = scmp.eq.s32.totalorder %s229, 0
      %s232 = sadd.s32 %s231, 1
      %s233 = scalar_select %p230, %s231, %s232
      %p236 = pneg %p230
      %p237 = scmp.eq.s32.totalorder %s37, 3
      %p238 = por %p236, %p237
      %p239 = scmp.ne.s32.totalorder %s231, %s234
      %p240 = scmp.eq.s32.totalorder %s37, 0
      %p241 = por %p239, %p240
      %p242 = scmp.ne.s32.totalorder %s231, %s234
      %p243 = scmp.eq.s32.totalorder %s42, 3
      %p244 = por %p242, %p243
      %p245 = scmp.ne.s32.totalorder %s234, %s235
      %p246 = scmp.eq.s32.totalorder %s42, 0
      %p247 = por %p245, %p246
      %p248 = scmp.ne.s32.totalorder %s234, %s235
      %p249 = scmp.eq.s32.totalorder %s43, 3
      %p250 = por %p248, %p249
      %p252 = scmp.ne.s32.totalorder %s235, %s251
      %p253 = scmp.eq.s32.totalorder %s43, 0
      %p254 = por %p252, %p253
      %s255 = ssub.s32 %s45, %s52
      %p256 = scmp.eq.s32.totalorder %s255, 0
      %s258 = sadd.s32 %s257, 1
      %s259 = scalar_select %p256, %s257, %s258
      %p262 = pneg %p256
      %p263 = scmp.eq.s32.totalorder %s37, 3
      %p264 = por %p262, %p263
      %p265 = scmp.ne.s32.totalorder %s257, %s260
      %p266 = scmp.eq.s32.totalorder %s37, 0
      %p267 = por %p265, %p266
      %p268 = scmp.ne.s32.totalorder %s257, %s260
      %p269 = scmp.eq.s32.totalorder %s42, 3
      %p270 = por %p268, %p269
      %p271 = scmp.ne.s32.totalorder %s260, %s261
      %p272 = scmp.eq.s32.totalorder %s42, 0
      %p273 = por %p271, %p272
      %p274 = scmp.ne.s32.totalorder %s260, %s261
      %p275 = scmp.eq.s32.totalorder %s43, 3
      %p276 = por %p274, %p275
      %p278 = scmp.ne.s32.totalorder %s261, %s277
      %p279 = scmp.eq.s32.totalorder %s43, 0
      %p280 = por %p278, %p279
      %s281 = ssub.s32 %s45, %s52
      %p282 = scmp.eq.s32.totalorder %s281, 0
      %s284 = sadd.s32 %s283, 1
      %s285 = scalar_select %p282, %s283, %s284
      %p288 = pneg %p282
      %p289 = scmp.eq.s32.totalorder %s37, 3
      %p290 = por %p288, %p289
      %p291 = scmp.ne.s32.totalorder %s283, %s286
      %p292 = scmp.eq.s32.totalorder %s37, 0
      %p293 = por %p291, %p292
      %p294 = scmp.ne.s32.totalorder %s283, %s286
      %p295 = scmp.eq.s32.totalorder %s42, 3
      %p296 = por %p294, %p295
      %p297 = scmp.ne.s32.totalorder %s286, %s287
      %p298 = scmp.eq.s32.totalorder %s42, 0
      %p299 = por %p297, %p298
      %p300 = scmp.ne.s32.totalorder %s286, %s287
      %p301 = scmp.eq.s32.totalorder %s43, 3
      %p302 = por %p300, %p301
      %p304 = scmp.ne.s32.totalorder %s287, %s303
      %p305 = scmp.eq.s32.totalorder %s43, 0
      %p306 = por %p304, %p305
      %s307 = ssub.s32 %s45, %s52
      %p308 = scmp.eq.s32.totalorder %s307, 0
      %s310 = sadd.s32 %s309, 1
      %s311 = scalar_select %p308, %s309, %s310
      %p314 = pneg %p308
      %p315 = scmp.eq.s32.totalorder %s37, 3
      %p316 = por %p314, %p315
      %p317 = scmp.ne.s32.totalorder %s309, %s312
      %p318 = scmp.eq.s32.totalorder %s37, 0
      %p319 = por %p317, %p318
      %p320 = scmp.ne.s32.totalorder %s309, %s312
      %p321 = scmp.eq.s32.totalorder %s42, 3
      %p322 = por %p320, %p321
      %p323 = scmp.ne.s32.totalorder %s312, %s313
      %p324 = scmp.eq.s32.totalorder %s42, 0
      %p325 = por %p323, %p324
      %p326 = scmp.ne.s32.totalorder %s312, %s313
      %p327 = scmp.eq.s32.totalorder %s43, 3
      %p328 = por %p326, %p327
      %p330 = scmp.ne.s32.totalorder %s313, %s329
      %p331 = scmp.eq.s32.totalorder %s43, 0
      %p332 = por %p330, %p331
      %s333 = ssub.s32 %s45, %s52
      %p334 = scmp.eq.s32.totalorder %s333, 0
      %s336 = sadd.s32 %s335, 1
      %s337 = scalar_select %p334, %s335, %s336
      %p340 = pneg %p334
      %p341 = scmp.eq.s32.totalorder %s37, 3
      %p342 = por %p340, %p341
      %p343 = scmp.ne.s32.totalorder %s335, %s338
      %p344 = scmp.eq.s32.totalorder %s37, 0
      %p345 = por %p343, %p344
      %p346 = scmp.ne.s32.totalorder %s335, %s338
      %p347 = scmp.eq.s32.totalorder %s42, 3
      %p348 = por %p346, %p347
      %p349 = scmp.ne.s32.totalorder %s338, %s339
      %p350 = scmp.eq.s32.totalorder %s42, 0
      %p351 = por %p349, %p350
      %p352 = scmp.ne.s32.totalorder %s338, %s339
      %p353 = scmp.eq.s32.totalorder %s43, 3
      %p354 = por %p352, %p353
      %p356 = scmp.ne.s32.totalorder %s339, %s355
      %p357 = scmp.eq.s32.totalorder %s43, 0
      %p358 = por %p356, %p357
      %s359 = ssub.s32 %s45, %s52
      %p360 = scmp.eq.s32.totalorder %s359, 0
      %s362 = sadd.s32 %s361, 1
      %s363 = scalar_select %p360, %s361, %s362
      %p366 = pneg %p360
      %p367 = scmp.eq.s32.totalorder %s37, 3
      %p368 = por %p366, %p367
      %p369 = scmp.ne.s32.totalorder %s361, %s364
      %p370 = scmp.eq.s32.totalorder %s37, 0
      %p371 = por %p369, %p370
      %p372 = scmp.ne.s32.totalorder %s361, %s364
      %p373 = scmp.eq.s32.totalorder %s42, 3
      %p374 = por %p372, %p373
      %p375 = scmp.ne.s32.totalorder %s364, %s365
      %p376 = scmp.eq.s32.totalorder %s42, 0
      %p377 = por %p375, %p376
      %p378 = scmp.ne.s32.totalorder %s364, %s365
      %p379 = scmp.eq.s32.totalorder %s43, 3
      %p380 = por %p378, %p379
      %p382 = scmp.ne.s32.totalorder %s365, %s381
      %p383 = scmp.eq.s32.totalorder %s43, 0
      %p384 = por %p382, %p383
      %s385 = ssub.s32 %s45, %s52
      %p386 = scmp.eq.s32.totalorder %s385, 0
      %s388 = sadd.s32 %s387, 1
      %s389 = scalar_select %p386, %s387, %s388
      %p392 = pneg %p386
      %p393 = scmp.eq.s32.totalorder %s37, 3
      %p394 = por %p392, %p393
      %p395 = scmp.ne.s32.totalorder %s387, %s390
      %p396 = scmp.eq.s32.totalorder %s37, 0
      %p397 = por %p395, %p396
      %p398 = scmp.ne.s32.totalorder %s387, %s390
      %p399 = scmp.eq.s32.totalorder %s42, 3
      %p400 = por %p398, %p399
      %p401 = scmp.ne.s32.totalorder %s390, %s391
      %p402 = scmp.eq.s32.totalorder %s42, 0
      %p403 = por %p401, %p402
      %p404 = scmp.ne.s32.totalorder %s390, %s391
      %p405 = scmp.eq.s32.totalorder %s43, 3
      %p406 = por %p404, %p405
      %p408 = scmp.ne.s32.totalorder %s391, %s407
      %p409 = scmp.eq.s32.totalorder %s43, 0
      %p410 = por %p408, %p409
      %s411 = ssub.s32 %s45, %s52
      %p412 = scmp.eq.s32.totalorder %s411, 0
      %s414 = sadd.s32 %s413, 1
      %s415 = scalar_select %p412, %s413, %s414
      %p418 = pneg %p412
      %p419 = scmp.eq.s32.totalorder %s37, 3
      %p420 = por %p418, %p419
      %p421 = scmp.ne.s32.totalorder %s413, %s416
      %p422 = scmp.eq.s32.totalorder %s37, 0
      %p423 = por %p421, %p422
      %p424 = scmp.ne.s32.totalorder %s413, %s416
      %p425 = scmp.eq.s32.totalorder %s42, 3
      %p426 = por %p424, %p425
      %p427 = scmp.ne.s32.totalorder %s416, %s417
      %p428 = scmp.eq.s32.totalorder %s42, 0
      %p429 = por %p427, %p428
      %p430 = scmp.ne.s32.totalorder %s416, %s417
      %p431 = scmp.eq.s32.totalorder %s43, 3
      %p432 = por %p430, %p431
      %p434 = scmp.ne.s32.totalorder %s417, %s433
      %p435 = scmp.eq.s32.totalorder %s43, 0
      %p436 = por %p434, %p435
      %s437 = ssub.s32 %s45, %s52
      %p438 = scmp.eq.s32.totalorder %s437, 0
      %s440 = sadd.s32 %s439, 1
      %s441 = scalar_select %p438, %s439, %s440
      %p444 = pneg %p438
      %p445 = scmp.eq.s32.totalorder %s37, 3
      %p446 = por %p444, %p445
      %p447 = scmp.ne.s32.totalorder %s439, %s442
      %p448 = scmp.eq.s32.totalorder %s37, 0
      %p449 = por %p447, %p448
      %p450 = scmp.ne.s32.totalorder %s439, %s442
      %p451 = scmp.eq.s32.totalorder %s42, 3
      %p452 = por %p450, %p451
      %p453 = scmp.ne.s32.totalorder %s442, %s443
      %p454 = scmp.eq.s32.totalorder %s42, 0
      %p455 = por %p453, %p454
      %p456 = scmp.ne.s32.totalorder %s442, %s443
      %p457 = scmp.eq.s32.totalorder %s43, 3
      %p458 = por %p456, %p457
      %p460 = scmp.ne.s32.totalorder %s443, %s459
      %p461 = scmp.eq.s32.totalorder %s43, 0
      %p462 = por %p460, %p461
      %s463 = ssub.s32 %s45, %s52
      %p464 = scmp.eq.s32.totalorder %s463, 0
      %s466 = sadd.s32 %s465, 1
      %s467 = scalar_select %p464, %s465, %s466
      %p470 = pneg %p464
      %p471 = scmp.eq.s32.totalorder %s37, 3
      %p472 = por %p470, %p471
      %p473 = scmp.ne.s32.totalorder %s465, %s468
      %p474 = scmp.eq.s32.totalorder %s37, 0
      %p475 = por %p473, %p474
      %p476 = scmp.ne.s32.totalorder %s465, %s468
      %p477 = scmp.eq.s32.totalorder %s42, 3
      %p478 = por %p476, %p477
      %p479 = scmp.ne.s32.totalorder %s468, %s469
      %p480 = scmp.eq.s32.totalorder %s42, 0
      %p481 = por %p479, %p480
      %p482 = scmp.ne.s32.totalorder %s468, %s469
      %p483 = scmp.eq.s32.totalorder %s43, 3
      %p484 = por %p482, %p483
      %p486 = scmp.ne.s32.totalorder %s469, %s485
      %p487 = scmp.eq.s32.totalorder %s43, 0
      %p488 = por %p486, %p487
      %s490 = sadd.s32 %s489, 1
      %p493 = scmp.eq.s32.totalorder %s37, 3
      %p494 = scmp.ne.s32.totalorder %s489, %s491
      %p495 = scmp.eq.s32.totalorder %s37, 0
      %p496 = por %p494, %p495
      %p497 = scmp.ne.s32.totalorder %s489, %s491
      %p498 = scmp.eq.s32.totalorder %s42, 3
      %p499 = por %p497, %p498
      %p500 = scmp.ne.s32.totalorder %s491, %s492
      %p501 = scmp.eq.s32.totalorder %s42, 0
      %p502 = por %p500, %p501
      %p503 = scmp.ne.s32.totalorder %s491, %s492
      %p504 = scmp.eq.s32.totalorder %s43, 3
      %p505 = por %p503, %p504
      %p507 = scmp.ne.s32.totalorder %s492, %s506
      %p508 = scmp.eq.s32.totalorder %s43, 0
      %p509 = por %p507, %p508
      %s510 = ssub.s32 %s44, %s56
      %p511 = scmp.eq.s32.totalorder %s510, 0
      %s513 = sadd.s32 %s512, 1
      %s514 = scalar_select %p511, %s512, %s513
      %p517 = pneg %p511
      %p518 = scmp.eq.s32.totalorder %s37, 3
      %p519 = por %p517, %p518
      %p520 = scmp.ne.s32.totalorder %s512, %s515
      %p521 = scmp.eq.s32.totalorder %s37, 0
      %p522 = por %p520, %p521
      %p523 = scmp.ne.s32.totalorder %s512, %s515
      %p524 = scmp.eq.s32.totalorder %s42, 3
      %p525 = por %p523, %p524
      %p526 = scmp.ne.s32.totalorder %s515, %s516
      %p527 = scmp.eq.s32.totalorder %s42, 0
      %p528 = por %p526, %p527
      %p529 = scmp.ne.s32.totalorder %s515, %s516
      %p530 = scmp.eq.s32.totalorder %s43, 3
      %p531 = por %p529, %p530
      %p533 = scmp.ne.s32.totalorder %s516, %s532
      %p534 = scmp.eq.s32.totalorder %s43, 0
      %p535 = por %p533, %p534
      %p536 = scmp.le.s32.totalorder 1, %s37
      %p537 = scmp.lt.s32.totalorder %s37, 5
      %p538 = pnand %p536, %p537
      %p539 = pneg %p538
      // Predicated region
      $region9: #{tpu_custom_call.1} parent=5 // pred_check
        _
      $region10: #{tpu_custom_call.1} parent=5 // pred_check_branch
        %541 = sbr.rel (%p538) target = $region12
      $region11: #{tpu_custom_call.1} parent=5 // pred_region
        %s542 = ssub.s32 %s37, 1
        // Predicated region
        $region13: #{tpu_custom_call.1} parent=11 // pred_check
          %p543 = pneg %p96
        $region14: #{tpu_custom_call.1} parent=11 // pred_check_branch
          %545 = sbr.rel (%p543) target = $region16
        $region15: #{tpu_custom_call.1} parent=11 // pred_region
          _
        $region16: #{tpu_custom_call.1} parent=11 // pred_fallthru
          _
        // Predicated region
        $region17: #{tpu_custom_call.1} parent=11 // pred_check
          %p546 = pneg %p117
        $region18: #{tpu_custom_call.1} parent=11 // pred_check_branch
          %548 = sbr.rel (%p546) target = $region20
        $region19: #{tpu_custom_call.1} parent=11 // pred_region
          %s550 = ssub.s32 16, 16
          %551 = vsyncadd [#allocation4], %s550
          %s553 = sshll.u32 [#allocation3], 4
          %s554 = int_to_ptr.vmem [resolvable:$true] %s553
          %556 = dma.hbm_to_vmem [thread:$0]  %s2, 16, %s554, [#allocation4]
        $region20: #{tpu_custom_call.1} parent=11 // pred_fallthru
          _
        // Predicated region
        $region21: #{tpu_custom_call.1} parent=11 // pred_check
          %p557 = pneg %p502
        $region22: #{tpu_custom_call.1} parent=11 // pred_check_branch
          %559 = sbr.rel (%p557) target = $region24
        $region23: #{tpu_custom_call.1} parent=11 // pred_region
          _
        $region24: #{tpu_custom_call.1} parent=11 // pred_fallthru
          _
      $region12: #{tpu_custom_call.1} parent=5 // pred_fallthru
        _
      %p560 = scmp.lt.s32.totalorder %s37, 4
      // Predicated region
      $region25: #{tpu_custom_call.1} parent=5 // pred_check
        %p561 = pneg %p560
      $region26: #{tpu_custom_call.1} parent=5 // pred_check_branch
        %563 = sbr.rel (%p561) target = $region28
      $region27: #{tpu_custom_call.1} parent=5 // pred_region
        // Predicated region
        $region29: #{tpu_custom_call.1} parent=27 // pred_check
          %p564 = pneg %p69
        $region30: #{tpu_custom_call.1} parent=27 // pred_check_branch
          %566 = sbr.rel (%p564) target = $region32
        $region31: #{tpu_custom_call.1} parent=27 // pred_region
          %p567 = scmp.lt.s32.totalorder %s44, 1
          %s568 = scalar_select %p567, %s44, 1
          %s569 = smul.addr %s568, 8
          %s570 = scalar_lea.vmem %s0, %s569
        $region32: #{tpu_custom_call.1} parent=27 // pred_fallthru
          _
        // Predicated region
        $region33: #{tpu_custom_call.1} parent=27 // pred_check
          %p571 = pneg %p137
        $region34: #{tpu_custom_call.1} parent=27 // pred_check_branch
          %573 = sbr.rel (%p571) target = $region36
        $region35: #{tpu_custom_call.1} parent=27 // pred_region
          %p574 = scmp.lt.s32.totalorder %s44, 1
          %s575 = scalar_select %p574, %s44, 1
          %s576 = scalar_lea.vmem %s3, %s575
        $region36: #{tpu_custom_call.1} parent=27 // pred_fallthru
          _
        // Predicated region
        $region37: #{tpu_custom_call.1} parent=27 // pred_check
          %p577 = pneg %p163
        $region38: #{tpu_custom_call.1} parent=27 // pred_check_branch
          %579 = sbr.rel (%p577) target = $region40
        $region39: #{tpu_custom_call.1} parent=27 // pred_region
          %p580 = scmp.lt.s32.totalorder %s44, 1
          %s581 = scalar_select %p580, %s44, 1
          %s582 = smul.addr %s581, 8
          %s583 = scalar_lea.vmem %s4, %s582
        $region40: #{tpu_custom_call.1} parent=27 // pred_fallthru
          _
        // Predicated region
        $region41: #{tpu_custom_call.1} parent=27 // pred_check
          %p584 = pneg %p189
        $region42: #{tpu_custom_call.1} parent=27 // pred_check_branch
          %586 = sbr.rel (%p584) target = $region44
        $region43: #{tpu_custom_call.1} parent=27 // pred_region
          %p587 = scmp.lt.s32.totalorder %s45, 1
          %s588 = scalar_select %p587, %s45, 1
          %s589 = smul.addr %s588, 4
          %s590 = smul.addr %s589, 4
          %s591 = scalar_lea.vmem %s5, %s590
        $region44: #{tpu_custom_call.1} parent=27 // pred_fallthru
          _
        // Predicated region
        $region45: #{tpu_custom_call.1} parent=27 // pred_check
          %p592 = pneg %p215
        $region46: #{tpu_custom_call.1} parent=27 // pred_check_branch
          %594 = sbr.rel (%p592) target = $region48
        $region47: #{tpu_custom_call.1} parent=27 // pred_region
          %s595 = sand.u32 %s37, 1
          %s596 = scalar_lea.sflag [#allocation7], %s595
          %s597 = sand.u32 %s205, 1
          %s598 = scalar_lea.vmem [#allocation6], %s597
          %s600 = ssub.s32 16, 16
          %601 = vsyncadd %s596, %s600
          %s602 = smul.addr %s45, 16
          %s603 = scalar_lea.hbm %s6, %s602
          %s605 = sshll.u32 %s598, 4
          %s606 = int_to_ptr.vmem [resolvable:$true] %s605
          %608 = dma.hbm_to_vmem [thread:$0]  %s603, 16, %s606, %s596
        $region48: #{tpu_custom_call.1} parent=27 // pred_fallthru
          _
        // Predicated region
        $region49: #{tpu_custom_call.1} parent=27 // pred_check
          %p609 = pneg %p241
        $region50: #{tpu_custom_call.1} parent=27 // pred_check_branch
          %611 = sbr.rel (%p609) target = $region52
        $region51: #{tpu_custom_call.1} parent=27 // pred_region
          %p612 = scmp.lt.s32.totalorder %s45, 1
          %s613 = scalar_select %p612, %s45, 1
          %s614 = smul.addr %s613, 4
          %s615 = smul.addr %s614, 4
          %s616 = scalar_lea.vmem %s7, %s615
        $region52: #{tpu_custom_call.1} parent=27 // pred_fallthru
          _
        // Predicated region
        $region53: #{tpu_custom_call.1} parent=27 // pred_check
          %p617 = pneg %p267
        $region54: #{tpu_custom_call.1} parent=27 // pred_check_branch
          %619 = sbr.rel (%p617) target = $region56
        $region55: #{tpu_custom_call.1} parent=27 // pred_region
          %s620 = sand.u32 %s37, 1
          %s621 = scalar_lea.sflag [#allocation7], %s620
          %s622 = sand.u32 %s257, 1
          %s623 = scalar_lea.vmem [#allocation8], %s622
          %s625 = ssub.s32 16, 16
          %626 = vsyncadd %s621, %s625
          %s627 = smul.addr %s45, 16
          %s628 = scalar_lea.hbm %s8, %s627
          %s630 = sshll.u32 %s623, 4
          %s631 = int_to_ptr.vmem [resolvable:$true] %s630
          %633 = dma.hbm_to_vmem [thread:$0]  %s628, 16, %s631, %s621
        $region56: #{tpu_custom_call.1} parent=27 // pred_fallthru
          _
        // Predicated region
        $region57: #{tpu_custom_call.1} parent=27 // pred_check
          %p634 = pneg %p293
        $region58: #{tpu_custom_call.1} parent=27 // pred_check_branch
          %636 = sbr.rel (%p634) target = $region60
        $region59: #{tpu_custom_call.1} parent=27 // pred_region
          %s637 = sand.u32 %s37, 1
          %s638 = scalar_lea.sflag [#allocation10], %s637
          %s639 = sand.u32 %s283, 1
          %s640 = scalar_lea.vmem [#allocation9], %s639
          %s642 = ssub.s32 16, 16
          %643 = vsyncadd %s638, %s642
          %s644 = smul.addr %s45, 16
          %s645 = scalar_lea.hbm %s9, %s644
          %s647 = sshll.u32 %s640, 4
          %s648 = int_to_ptr.vmem [resolvable:$true] %s647
          %650 = dma.hbm_to_vmem [thread:$0]  %s645, 16, %s648, %s638
        $region60: #{tpu_custom_call.1} parent=27 // pred_fallthru
          _
        // Predicated region
        $region61: #{tpu_custom_call.1} parent=27 // pred_check
          %p651 = pneg %p319
        $region62: #{tpu_custom_call.1} parent=27 // pred_check_branch
          %653 = sbr.rel (%p651) target = $region64
        $region63: #{tpu_custom_call.1} parent=27 // pred_region
          %s654 = sand.u32 %s37, 1
          %s655 = scalar_lea.sflag [#allocation10], %s654
          %s656 = sand.u32 %s309, 1
          %s657 = scalar_lea.vmem [#allocation11], %s656
          %s659 = ssub.s32 16, 16
          %660 = vsyncadd %s655, %s659
          %s661 = smul.addr %s45, 16
          %s662 = scalar_lea.hbm %s10, %s661
          %s664 = sshll.u32 %s657, 4
          %s665 = int_to_ptr.vmem [resolvable:$true] %s664
          %667 = dma.hbm_to_vmem [thread:$0]  %s662, 16, %s665, %s655
        $region64: #{tpu_custom_call.1} parent=27 // pred_fallthru
          _
        // Predicated region
        $region65: #{tpu_custom_call.1} parent=27 // pred_check
          %p668 = pneg %p345
        $region66: #{tpu_custom_call.1} parent=27 // pred_check_branch
          %670 = sbr.rel (%p668) target = $region68
        $region67: #{tpu_custom_call.1} parent=27 // pred_region
          %p671 = scmp.lt.s32.totalorder %s45, 1
          %s672 = scalar_select %p671, %s45, 1
          %s673 = smul.addr %s672, 4
          %s674 = smul.addr %s673, 4
          %s675 = scalar_lea.vmem %s11, %s674
        $region68: #{tpu_custom_call.1} parent=27 // pred_fallthru
          _
        // Predicated region
        $region69: #{tpu_custom_call.1} parent=27 // pred_check
          %p676 = pneg %p371
        $region70: #{tpu_custom_call.1} parent=27 // pred_check_branch
          %678 = sbr.rel (%p676) target = $region72
        $region71: #{tpu_custom_call.1} parent=27 // pred_region
          %s679 = sand.u32 %s361, 1
          %s680 = scalar_lea.sflag [#allocation13], %s679
          %s681 = sand.u32 %s361, 1
          %s682 = scalar_lea.vmem [#allocation12], %s681
          %s684 = ssub.s32 16, 16
          %685 = vsyncadd %s680, %s684
          %s686 = smul.addr %s45, 16
          %s687 = scalar_lea.hbm %s12, %s686
          %s689 = sshll.u32 %s682, 4
          %s690 = int_to_ptr.vmem [resolvable:$true] %s689
          %692 = dma.hbm_to_vmem [thread:$0]  %s687, 16, %s690, %s680
        $region72: #{tpu_custom_call.1} parent=27 // pred_fallthru
          _
        // Predicated region
        $region73: #{tpu_custom_call.1} parent=27 // pred_check
          %p693 = pneg %p397
        $region74: #{tpu_custom_call.1} parent=27 // pred_check_branch
          %695 = sbr.rel (%p693) target = $region76
        $region75: #{tpu_custom_call.1} parent=27 // pred_region
          %p696 = scmp.lt.s32.totalorder %s45, 1
          %s697 = scalar_select %p696, %s45, 1
          %s698 = smul.addr %s697, 8
          %s699 = smul.addr %s698, 4
          %s700 = scalar_lea.vmem %s13, %s699
        $region76: #{tpu_custom_call.1} parent=27 // pred_fallthru
          _
        // Predicated region
        $region77: #{tpu_custom_call.1} parent=27 // pred_check
          %p701 = pneg %p423
        $region78: #{tpu_custom_call.1} parent=27 // pred_check_branch
          %703 = sbr.rel (%p701) target = $region80
        $region79: #{tpu_custom_call.1} parent=27 // pred_region
          %p704 = scmp.lt.s32.totalorder %s45, 1
          %s705 = scalar_select %p704, %s45, 1
          %s706 = scalar_lea.vmem %s14, %s705
        $region80: #{tpu_custom_call.1} parent=27 // pred_fallthru
          _
        // Predicated region
        $region81: #{tpu_custom_call.1} parent=27 // pred_check
          %p707 = pneg %p449
        $region82: #{tpu_custom_call.1} parent=27 // pred_check_branch
          %709 = sbr.rel (%p707) target = $region84
        $region83: #{tpu_custom_call.1} parent=27 // pred_region
          %p710 = scmp.lt.s32.totalorder %s45, 1
          %s711 = scalar_select %p710, %s45, 1
          %s712 = scalar_lea.vmem %s15, %s711
        $region84: #{tpu_custom_call.1} parent=27 // pred_fallthru
          _
        // Predicated region
        $region85: #{tpu_custom_call.1} parent=27 // pred_check
          %p713 = pneg %p475
        $region86: #{tpu_custom_call.1} parent=27 // pred_check_branch
          %715 = sbr.rel (%p713) target = $region88
        $region87: #{tpu_custom_call.1} parent=27 // pred_region
          %p716 = scmp.lt.s32.totalorder %s45, 1
          %s717 = scalar_select %p716, %s45, 1
          %s718 = scalar_lea.vmem %s16, %s717
        $region88: #{tpu_custom_call.1} parent=27 // pred_fallthru
          _
      $region28: #{tpu_custom_call.1} parent=5 // pred_fallthru
        _
      %p719 = scmp.le.s32.totalorder 1, %s37
      %p720 = scmp.lt.s32.totalorder %s37, 5
      %p721 = pnand %p719, %p720
      %p722 = pneg %p721
      // Predicated region
      $region89: #{tpu_custom_call.1} parent=5 // pred_check
        _
      $region90: #{tpu_custom_call.1} parent=5 // pred_check_branch
        %724 = sbr.rel (%p721) target = $region92
      $region91: #{tpu_custom_call.1} parent=5 // pred_region
        %s725 = ssub.s32 %s37, 1
        // Predicated region
        $region93: #{tpu_custom_call.1} parent=91 // pred_check
          %p726 = pneg %p117
        $region94: #{tpu_custom_call.1} parent=91 // pred_check_branch
          %728 = sbr.rel (%p726) target = $region96
        $region95: #{tpu_custom_call.1} parent=91 // pred_region
          %729 = dma.done [#allocation4], 16
        $region96: #{tpu_custom_call.1} parent=91 // pred_fallthru
          _
        %s730 = sand.u32 %s42, 1
        %s731 = scalar_lea.sflag [#allocation7], %s730
        %s732 = sand.u32 %s208, 1
        %s733 = scalar_lea.vmem [#allocation6], %s732
        // Predicated region
        $region97: #{tpu_custom_call.1} parent=91 // pred_check
          %p734 = pneg %p221
        $region98: #{tpu_custom_call.1} parent=91 // pred_check_branch
          %736 = sbr.rel (%p734) target = $region100
        $region99: #{tpu_custom_call.1} parent=91 // pred_region
          %737 = dma.done %s731, 16
        $region100: #{tpu_custom_call.1} parent=91 // pred_fallthru
          _
        %s738 = sand.u32 %s42, 1
        %s739 = scalar_lea.sflag [#allocation7], %s738
        %s740 = sand.u32 %s260, 1
        %s741 = scalar_lea.vmem [#allocation8], %s740
        // Predicated region
        $region101: #{tpu_custom_call.1} parent=91 // pred_check
          %p742 = pneg %p273
        $region102: #{tpu_custom_call.1} parent=91 // pred_check_branch
          %744 = sbr.rel (%p742) target = $region104
        $region103: #{tpu_custom_call.1} parent=91 // pred_region
          %745 = dma.done %s739, 16
        $region104: #{tpu_custom_call.1} parent=91 // pred_fallthru
          _
        %s746 = sand.u32 %s42, 1
        %s747 = scalar_lea.sflag [#allocation10], %s746
        %s748 = sand.u32 %s286, 1
        %s749 = scalar_lea.vmem [#allocation9], %s748
        // Predicated region
        $region105: #{tpu_custom_call.1} parent=91 // pred_check
          %p750 = pneg %p299
        $region106: #{tpu_custom_call.1} parent=91 // pred_check_branch
          %752 = sbr.rel (%p750) target = $region108
        $region107: #{tpu_custom_call.1} parent=91 // pred_region
          %753 = dma.done %s747, 16
        $region108: #{tpu_custom_call.1} parent=91 // pred_fallthru
          _
        %s754 = sand.u32 %s42, 1
        %s755 = scalar_lea.sflag [#allocation10], %s754
        %s756 = sand.u32 %s312, 1
        %s757 = scalar_lea.vmem [#allocation11], %s756
        // Predicated region
        $region109: #{tpu_custom_call.1} parent=91 // pred_check
          %p758 = pneg %p325
        $region110: #{tpu_custom_call.1} parent=91 // pred_check_branch
          %760 = sbr.rel (%p758) target = $region112
        $region111: #{tpu_custom_call.1} parent=91 // pred_region
          %761 = dma.done %s755, 16
        $region112: #{tpu_custom_call.1} parent=91 // pred_fallthru
          _
        %s762 = sand.u32 %s364, 1
        %s763 = scalar_lea.sflag [#allocation13], %s762
        %s764 = sand.u32 %s364, 1
        %s765 = scalar_lea.vmem [#allocation12], %s764
        // Predicated region
        $region113: #{tpu_custom_call.1} parent=91 // pred_check
          %p766 = pneg %p377
        $region114: #{tpu_custom_call.1} parent=91 // pred_check_branch
          %768 = sbr.rel (%p766) target = $region116
        $region115: #{tpu_custom_call.1} parent=91 // pred_region
          %769 = dma.done %s763, 16
        $region116: #{tpu_custom_call.1} parent=91 // pred_fallthru
          _
        %p770 = scmp.lt.s32.totalorder %s46, 1
        %s771 = scalar_select %p770, %s46, 1
        %s772 = smul.addr %s771, 8
        %s773 = scalar_lea.vmem %s0, %s772
        %p774 = pneg %p75
        %p775 = pneg %p72
        %p776 = pneg %p96
        %p777 = pneg %p93
        %p778 = pneg %p117
        %p779 = pneg %p114
        %p780 = scmp.lt.s32.totalorder %s46, 1
        %s781 = scalar_select %p780, %s46, 1
        %s782 = scalar_lea.vmem %s3, %s781
        %p783 = pneg %p143
        %p784 = pneg %p140
        %p785 = scmp.lt.s32.totalorder %s46, 1
        %s786 = scalar_select %p785, %s46, 1
        %s787 = smul.addr %s786, 8
        %s788 = scalar_lea.vmem %s4, %s787
        %p789 = pneg %p169
        %p790 = pneg %p166
        %p791 = scmp.lt.s32.totalorder %s47, 1
        %s792 = scalar_select %p791, %s47, 1
        %s793 = smul.addr %s792, 4
        %s794 = smul.addr %s793, 4
        %s795 = scalar_lea.vmem %s5, %s794
        %p796 = pneg %p195
        %p797 = pneg %p192
        %s798 = sand.u32 %s42, 1
        %s799 = scalar_lea.sflag [#allocation7], %s798
        %s800 = sand.u32 %s208, 1
        %s801 = scalar_lea.vmem [#allocation6], %s800
        %p802 = pneg %p221
        %p803 = pneg %p218
        %p804 = scmp.lt.s32.totalorder %s47, 1
        %s805 = scalar_select %p804, %s47, 1
        %s806 = smul.addr %s805, 4
        %s807 = smul.addr %s806, 4
        %s808 = scalar_lea.vmem %s7, %s807
        %p809 = pneg %p247
        %p810 = pneg %p244
        %s811 = sand.u32 %s42, 1
        %s812 = scalar_lea.sflag [#allocation7], %s811
        %s813 = sand.u32 %s260, 1
        %s814 = scalar_lea.vmem [#allocation8], %s813
        %p815 = pneg %p273
        %p816 = pneg %p270
        %s817 = sand.u32 %s42, 1
        %s818 = scalar_lea.sflag [#allocation10], %s817
        %s819 = sand.u32 %s286, 1
        %s820 = scalar_lea.vmem [#allocation9], %s819
        %p821 = pneg %p299
        %p822 = pneg %p296
        %s823 = sand.u32 %s42, 1
        %s824 = scalar_lea.sflag [#allocation10], %s823
        %s825 = sand.u32 %s312, 1
        %s826 = scalar_lea.vmem [#allocation11], %s825
        %p827 = pneg %p325
        %p828 = pneg %p322
        %p829 = scmp.lt.s32.totalorder %s47, 1
        %s830 = scalar_select %p829, %s47, 1
        %s831 = smul.addr %s830, 4
        %s832 = smul.addr %s831, 4
        %s833 = scalar_lea.vmem %s11, %s832
        %p834 = pneg %p351
        %p835 = pneg %p348
        %s836 = sand.u32 %s364, 1
        %s837 = scalar_lea.sflag [#allocation13], %s836
        %s838 = sand.u32 %s364, 1
        %s839 = scalar_lea.vmem [#allocation12], %s838
        %p840 = pneg %p377
        %p841 = pneg %p374
        %p842 = scmp.lt.s32.totalorder %s47, 1
        %s843 = scalar_select %p842, %s47, 1
        %s844 = smul.addr %s843, 8
        %s845 = smul.addr %s844, 4
        %s846 = scalar_lea.vmem %s13, %s845
        %p847 = pneg %p403
        %p848 = pneg %p400
        %p849 = scmp.lt.s32.totalorder %s47, 1
        %s850 = scalar_select %p849, %s47, 1
        %s851 = scalar_lea.vmem %s14, %s850
        %p852 = pneg %p429
        %p853 = pneg %p426
        %p854 = scmp.lt.s32.totalorder %s47, 1
        %s855 = scalar_select %p854, %s47, 1
        %s856 = scalar_lea.vmem %s15, %s855
        %p857 = pneg %p455
        %p858 = pneg %p452
        %p859 = scmp.lt.s32.totalorder %s47, 1
        %s860 = scalar_select %p859, %s47, 1
        %s861 = scalar_lea.vmem %s16, %s860
        %p862 = pneg %p481
        %p863 = pneg %p478
        %p864 = pneg %p502
        %p865 = pneg %p499
        %p866 = pneg %p528
        %p867 = pneg %p525
        %s868 = sand.u32 %s515, 1
        %s869 = scalar_lea.sflag [#allocation5], %s868
        %s870 = sand.u32 %s515, 1
        %s871 = scalar_lea.vmem [#allocation14], %s870
        %p872 = scmp.lt.s32.totalorder %s46, 1
        %s873 = scalar_select %p872, %s46, 1
        %s874 = smul.addr %s873, 8
        %s875 = scalar_lea.vmem %s0, %s874
        %p876 = scmp.lt.s32.totalorder %s46, 1
        %s877 = scalar_select %p876, %s46, 1
        %s878 = scalar_lea.vmem %s3, %s877
        %p879 = scmp.lt.s32.totalorder %s46, 1
        %s880 = scalar_select %p879, %s46, 1
        %s881 = smul.addr %s880, 8
        %s882 = scalar_lea.vmem %s4, %s881
        %p883 = scmp.lt.s32.totalorder %s47, 1
        %s884 = scalar_select %p883, %s47, 1
        %s885 = smul.addr %s884, 4
        %s886 = smul.addr %s885, 4
        %s887 = scalar_lea.vmem %s5, %s886
        %p888 = scmp.lt.s32.totalorder %s47, 1
        %s889 = scalar_select %p888, %s47, 1
        %s890 = smul.addr %s889, 4
        %s891 = smul.addr %s890, 4
        %s892 = scalar_lea.vmem %s7, %s891
        %p893 = scmp.lt.s32.totalorder %s47, 1
        %s894 = scalar_select %p893, %s47, 1
        %s895 = smul.addr %s894, 4
        %s896 = smul.addr %s895, 4
        %s897 = scalar_lea.vmem %s11, %s896
        %p898 = scmp.lt.s32.totalorder %s47, 1
        %s899 = scalar_select %p898, %s47, 1
        %s900 = smul.addr %s899, 8
        %s901 = smul.addr %s900, 4
        %s902 = scalar_lea.vmem %s13, %s901
        %p903 = scmp.lt.s32.totalorder %s47, 1
        %s904 = scalar_select %p903, %s47, 1
        %s905 = scalar_lea.vmem %s14, %s904
        %p906 = scmp.lt.s32.totalorder %s47, 1
        %s907 = scalar_select %p906, %s47, 1
        %s908 = scalar_lea.vmem %s15, %s907
        %p909 = scmp.lt.s32.totalorder %s47, 1
        %s910 = scalar_select %p909, %s47, 1
        %s911 = scalar_lea.vmem %s16, %s910
        %p913 = scmp.eq.s32.totalorder %s47, 0
        // Predicated region
        $region117: #{tpu_custom_call.1} parent=91 // pred_check
          %p914 = pneg %p913
        $region118: #{tpu_custom_call.1} parent=91 // pred_check_branch
          %916 = sbr.rel (%p914) target = $region120
        $region119: #{tpu_custom_call.1} parent=91 // pred_region
          %v917 = vld [vmem:[%s875] sm:$0xff]
          %v918 = vld [vmem:[%s1] sm:$0x1]
          %v919 = vld [vmem:[#allocation3] sm:$0x1]
          %vm920 = vcmask 261120
          %v921 = vsel %vm920, %v917, 0.0
          %922 = vadd.xlane.f32.xlu0 %v921
          %v923 = vpop.xlane.xlu0 %922
          %v924 = vrcp.pop 32.0
          %v925 = vmul.f32 %v923, %v924
          %v926 = vsub.f32 %v917, %v925
          %v927 = vmul.f32 %v926, %v926
          %v928 = vsel %vm920, %v927, 0.0
          %929 = vadd.xlane.f32.xlu0 %v928
          %v930 = vpop.xlane.xlu0 %929
          %v931 = vmul.f32 %v930, %v924
          %v932 = vadd.f32 %v931, 1e-12
          %v933 = vrsqrt.pop %v932
          %v934 = vmul.f32 %v926, %v933
          %v936 = vlaneseq
          %v937 = vshrl.u32 %v936, 7
          %v938 = vsub.s32 0, %v937
          %v939 = vrot.slane %v918, %v938
          %v941 = vmul.f32 %v934, %v939
          %v943 = vlaneseq
          %v944 = vshrl.u32 %v943, 7
          %v945 = vsub.s32 0, %v944
          %v946 = vrot.slane %v919, %v945
          %v948 = vadd.f32 %v941, %v946
          %949 = vst.msk [vmem:[#allocation2] sm:$0xff] %vm920, %v948
        $region120: #{tpu_custom_call.1} parent=91 // pred_fallthru
          _
        %v950 = vld [vmem:[#allocation2] sm:$0xff]
        %v951 = vpack.c.bf16 %v950, %v950
        %v952 = vld [vmem:[%s887] sm:$0xf]
        %v953 = vld [vmem:[%s887 + $0x4] sm:$0xf]
        %v954 = vld [vmem:[%s887 + $0x8] sm:$0xf]
        %v955 = vld [vmem:[%s887 + $0xc] sm:$0xf]
        %v956 = vld [vmem:[%s733] sm:$0x1]
        %v958 = vlaneseq
        %v959 = vshrl.u32 %v958, 7
        %v960 = vsub.s32 0, %v959
        %v961 = vrot.slane %v956, %v960
        %v967 = vunpack.c.l.b16 %v952
        %v968 = vunpack.c.l.b16 %v953
        %v969 = vunpack.c.l.b16 %v954
        %v970 = vunpack.c.l.b16 %v955
        %v971 = vpack.c.b16 %v968, %v967
        %v972 = vpack.c.b16 %v970, %v969
        %vm975 = vcmask 261120
        %v977 = vsel %vm975, %v951, 0
        %979 = vmatprep.subr.bf16.mxu0 0
        %980 = vmatpush1.bf16.msra.mxu0 %v971
        %981 = vmatprep.subr.bf16.mxu0 0
        %982 = vmatpush1.bf16.msra.mxu0 %v972
        %983 = vmatprep.subr.bf16.mxu0 0
        %984 = vmatpush1.bf16.msra.mxu0 0
        %985 = vmatprep.subr.bf16.mxu0 0
        %986 = vmatpush1.bf16.msra.mxu0 0
        %987 = vmatprep.subr.bf16.mxu0 0
        %988 = vmatpush1.bf16.msra.mxu0 0
        %989 = vmatprep.subr.bf16.mxu0 0
        %990 = vmatpush1.bf16.msra.mxu0 0
        %991 = vmatprep.subr.bf16.mxu0 0
        %992 = vmatpush1.bf16.msra.mxu0 0
        %993 = vmatprep.subr.bf16.mxu0 0
        %994 = vmatpush1.bf16.msra.mxu0 0
        %995 = vmatprep.subr.bf16.mxu0 0
        %996 = vmatpush1.bf16.msra.mxu0 0
        %997 = vmatprep.subr.bf16.mxu0 0
        %998 = vmatpush1.bf16.msra.mxu0 0
        %999 = vmatprep.subr.bf16.mxu0 0
        %1000 = vmatpush1.bf16.msra.mxu0 0
        %1001 = vmatprep.subr.bf16.mxu0 0
        %1002 = vmatpush1.bf16.msra.mxu0 0
        %1003 = vmatprep.subr.bf16.mxu0 0
        %1004 = vmatpush1.bf16.msra.mxu0 0
        %1005 = vmatprep.subr.bf16.mxu0 0
        %1006 = vmatpush1.bf16.msra.mxu0 0
        %1007 = vmatprep.subr.bf16.mxu0 0
        %1008 = vmatpush1.bf16.msra.mxu0 0
        %1009 = vmatprep.subr.bf16.mxu0 0
        %1010 = vmatpush1.bf16.msra.mxu0 0
        %1011 = vmatprep.mubr.bf16.mxu0 0
        %1012 = vmatmul.mubr.bf16.gmra.mrb[0].mxu0 %v977
        %v1013 = vpop.f32.mrb[0].mxu0
        %v1014 = vadd.f32 %v961, %v1013
        %v1015 = vpop.f32.mrb[0].mxu0
        %v1016 = vpop.f32.mrb[0].mxu0
        %v1017 = vpop.f32.mrb[0].mxu0
        %1018 = vdwg.mxu0
        %v1019 = vld [vmem:[%s878] sm:$0x1]
        %1021 = vrot.lane.b32.xlu0 %v1014, 96
        %v1022 = vpop.permute.xlu0 %1021
        %vm1023 = vcmask 64512
        %v1024 = vsel %vm1023, %v1014, 0
        %v1026 = vsel %vm1023, %v1022, 0
        %1028 = vmatprep.subr.mxu0 0.0
        %1029 = vmatpush1.xpose.msra.mxu0 %v1026
        %1030 = vmatprep.subr.mxu0 0.0
        %1031 = vmatpush1.xpose.msra.mxu0 0.0
        %1032 = vmatprep.subr.mxu0 0.0
        %1033 = vmatpush1.xpose.msra.mxu0 0.0
        %1034 = vmatprep.subr.mxu0 0.0
        %1035 = vmatpush1.xpose.msra.mxu0 0.0
        %1036 = vmatprep.subr.mxu0 0.0
        %1037 = vmatpush1.xpose.msra.mxu0 0.0
        %1038 = vmatprep.subr.mxu0 0.0
        %1039 = vmatpush1.xpose.msra.mxu0 0.0
        %1040 = vmatprep.subr.mxu0 0.0
        %1041 = vmatpush1.xpose.msra.mxu0 0.0
        %1042 = vmatprep.subr.mxu0 0.0
        %1043 = vmatpush1.xpose.msra.mxu0 0.0
        %1044 = vmatprep.subr.mxu0 0.0
        %1045 = vmatpush1.xpose.msra.mxu0 0.0
        %1046 = vmatprep.subr.mxu0 0.0
        %1047 = vmatpush1.xpose.msra.mxu0 0.0
        %1048 = vmatprep.subr.mxu0 0.0
        %1049 = vmatpush1.xpose.msra.mxu0 0.0
        %1050 = vmatprep.subr.mxu0 0.0
        %1051 = vmatpush1.xpose.msra.mxu0 0.0
        %1052 = vmatprep.subr.mxu0 0.0
        %1053 = vmatpush1.xpose.msra.mxu0 0.0
        %1054 = vmatprep.subr.mxu0 0.0
        %1055 = vmatpush1.xpose.msra.mxu0 0.0
        %1056 = vmatprep.subr.mxu0 0.0
        %1057 = vmatpush1.xpose.msra.mxu0 0.0
        %1058 = vmatprep.subr.mxu0 0.0
        %1059 = vmatpush1.xpose.msra.mxu0 0.0
        %1060 = vmatprep.subr.mxu0 0.0
        %1061 = vmatpush1.xpose.msra.mxu0 0.0
        %1062 = vmatprep.subr.mxu0 0.0
        %1063 = vmatpush1.xpose.msra.mxu0 0.0
        %1064 = vmatprep.subr.mxu0 0.0
        %1065 = vmatpush1.xpose.msra.mxu0 0.0
        %1066 = vmatprep.subr.mxu0 0.0
        %1067 = vmatpush1.xpose.msra.mxu0 0.0
        %1068 = vmatprep.subr.mxu0 0.0
        %1069 = vmatpush1.xpose.msra.mxu0 0.0
        %1070 = vmatprep.subr.mxu0 0.0
        %1071 = vmatpush1.xpose.msra.mxu0 0.0
        %1072 = vmatprep.subr.mxu0 0.0
        %1073 = vmatpush1.xpose.msra.mxu0 0.0
        %1074 = vmatprep.subr.mxu0 0.0
        %1075 = vmatpush1.xpose.msra.mxu0 0.0
        %1076 = vmatprep.subr.mxu0 0.0
        %1077 = vmatpush1.xpose.msra.mxu0 0.0
        %1078 = vmatprep.subr.mxu0 0.0
        %1079 = vmatpush1.xpose.msra.mxu0 0.0
        %1080 = vmatprep.subr.mxu0 0.0
        %1081 = vmatpush1.xpose.msra.mxu0 0.0
        %1082 = vmatprep.subr.mxu0 0.0
        %1083 = vmatpush1.xpose.msra.mxu0 0.0
        %1084 = vmatprep.subr.mxu0 0.0
        %1085 = vmatpush1.xpose.msra.mxu0 0.0
        %1086 = vmatprep.subr.mxu0 0.0
        %1087 = vmatpush1.xpose.msra.mxu0 0.0
        %1088 = vmatprep.subr.mxu0 0.0
        %1089 = vmatpush1.xpose.msra.mxu0 0.0
        %1090 = vmatprep.subr.mxu0 0.0
        %1091 = vmatpush1.xpose.msra.mxu0 0.0
        %1092 = vmatprep.mubr.f32.mxu0 0.0
        %1093 = vmatmul.mubr.f32.gmra.mrb[0].mxu0 %v1024
        %v1094 = vpop.f32.mrb[0].mxu0
        %v1095 = vadd.f32 0.0, %v1094
        %v1096 = vpop.f32.mrb[0].mxu0
        %1097 = vdwg.mxu0
        %v1098 = vmul.f32 %v1095, 0.35355338
        %v1100 = vlaneseq
        %v1101 = vshrl.u32 %v1100, 7
        %v1102 = vsub.s32 0, %v1101
        %v1103 = vrot.slane %v1019, %v1102
        %v1105 = vadd.f32 %v1098, %v1103
        %v1106 = vsel %vm1023, %v1105, -inf
        %1107 = vmax.xlane.f32.xlu0 %v1106
        %v1108 = vpop.xlane.xlu0 %1107
        %v1109 = vsub.f32 %v1105, %v1108
        %v1110 = vmul.f32 %v1109, 1.442695
        %v1111 = vpow.pop %v1110
        %v1112 = vsel %vm1023, %v1111, 0.0
        %1113 = vadd.xlane.f32.xlu0 %v1112
        %v1114 = vpop.xlane.xlu0 %1113
        %v1115 = vrcp.pop %v1114
        %v1116 = vmul.f32 %v1111, %v1115
        %v1117 = vpack.c.bf16 %v1116, %v1116
        %v1118 = vpack.c.bf16 %v1014, %v1014
        %1120 = vrot.lane.b32.xlu0 %v1118, 64
        %v1121 = vpop.permute.xlu0 %1120
        %v1123 = vsel %vm1023, %v1117, 0
        %vm1125 = vcmask 1043456
        %v1127 = vsel %vm1125, %v1121, 0
        %1129 = vmatprep.subr.bf16.mxu0 0
        %1130 = vmatpush1.bf16.msra.mxu0 %v1127
        %1131 = vmatprep.subr.bf16.mxu0 0
        %1132 = vmatpush1.bf16.msra.mxu0 0
        %1133 = vmatprep.subr.bf16.mxu0 0
        %1134 = vmatpush1.bf16.msra.mxu0 0
        %1135 = vmatprep.subr.bf16.mxu0 0
        %1136 = vmatpush1.bf16.msra.mxu0 0
        %1137 = vmatprep.subr.bf16.mxu0 0
        %1138 = vmatpush1.bf16.msra.mxu0 0
        %1139 = vmatprep.subr.bf16.mxu0 0
        %1140 = vmatpush1.bf16.msra.mxu0 0
        %1141 = vmatprep.subr.bf16.mxu0 0
        %1142 = vmatpush1.bf16.msra.mxu0 0
        %1143 = vmatprep.subr.bf16.mxu0 0
        %1144 = vmatpush1.bf16.msra.mxu0 0
        %1145 = vmatprep.subr.bf16.mxu0 0
        %1146 = vmatpush1.bf16.msra.mxu0 0
        %1147 = vmatprep.subr.bf16.mxu0 0
        %1148 = vmatpush1.bf16.msra.mxu0 0
        %1149 = vmatprep.subr.bf16.mxu0 0
        %1150 = vmatpush1.bf16.msra.mxu0 0
        %1151 = vmatprep.subr.bf16.mxu0 0
        %1152 = vmatpush1.bf16.msra.mxu0 0
        %1153 = vmatprep.subr.bf16.mxu0 0
        %1154 = vmatpush1.bf16.msra.mxu0 0
        %1155 = vmatprep.subr.bf16.mxu0 0
        %1156 = vmatpush1.bf16.msra.mxu0 0
        %1157 = vmatprep.subr.bf16.mxu0 0
        %1158 = vmatpush1.bf16.msra.mxu0 0
        %1159 = vmatprep.subr.bf16.mxu0 0
        %1160 = vmatpush1.bf16.msra.mxu0 0
        %1161 = vmatprep.mubr.bf16.mxu0 0
        %1162 = vmatmul.mubr.bf16.gmra.mrb[0].mxu0 %v1123
        %v1163 = vpop.f32.mrb[0].mxu0
        %v1164 = vadd.f32 0.0, %v1163
        %v1165 = vpop.f32.mrb[0].mxu0
        %v1166 = vpop.f32.mrb[0].mxu0
        %v1167 = vpop.f32.mrb[0].mxu0
        %1168 = vdwg.mxu0
        %v1169 = vpack.c.bf16 %v1164, %v1164
        %v1170 = vld [vmem:[%s892] sm:$0xf]
        %1171 = vrot.lane.b32.xlu0 %v1014, 120
        %v1172 = vpop.permute.xlu0 %1171
        %1173 = vrot.lane.b32.xlu0 %v1014, 88
        %v1174 = vpop.permute.xlu0 %1173
        %v1175 = vsel %vm1023, %v1172, 0
        %v1177 = vsel %vm1023, %v1174, 0
        %1179 = vmatprep.subr.mxu0 0.0
        %1180 = vmatpush1.xpose.msra.mxu0 %v1177
        %1181 = vmatprep.subr.mxu0 0.0
        %1182 = vmatpush1.xpose.msra.mxu0 0.0
        %1183 = vmatprep.subr.mxu0 0.0
        %1184 = vmatpush1.xpose.msra.mxu0 0.0
        %1185 = vmatprep.subr.mxu0 0.0
        %1186 = vmatpush1.xpose.msra.mxu0 0.0
        %1187 = vmatprep.subr.mxu0 0.0
        %1188 = vmatpush1.xpose.msra.mxu0 0.0
        %1189 = vmatprep.subr.mxu0 0.0
        %1190 = vmatpush1.xpose.msra.mxu0 0.0
        %1191 = vmatprep.subr.mxu0 0.0
        %1192 = vmatpush1.xpose.msra.mxu0 0.0
        %1193 = vmatprep.subr.mxu0 0.0
        %1194 = vmatpush1.xpose.msra.mxu0 0.0
        %1195 = vmatprep.subr.mxu0 0.0
        %1196 = vmatpush1.xpose.msra.mxu0 0.0
        %1197 = vmatprep.subr.mxu0 0.0
        %1198 = vmatpush1.xpose.msra.mxu0 0.0
        %1199 = vmatprep.subr.mxu0 0.0
        %1200 = vmatpush1.xpose.msra.mxu0 0.0
        %1201 = vmatprep.subr.mxu0 0.0
        %1202 = vmatpush1.xpose.msra.mxu0 0.0
        %1203 = vmatprep.subr.mxu0 0.0
        %1204 = vmatpush1.xpose.msra.mxu0 0.0
        %1205 = vmatprep.subr.mxu0 0.0
        %1206 = vmatpush1.xpose.msra.mxu0 0.0
        %1207 = vmatprep.subr.mxu0 0.0
        %1208 = vmatpush1.xpose.msra.mxu0 0.0
        %1209 = vmatprep.subr.mxu0 0.0
        %1210 = vmatpush1.xpose.msra.mxu0 0.0
        %1211 = vmatprep.subr.mxu0 0.0
        %1212 = vmatpush1.xpose.msra.mxu0 0.0
        %1213 = vmatprep.subr.mxu0 0.0
        %1214 = vmatpush1.xpose.msra.mxu0 0.0
        %1215 = vmatprep.subr.mxu0 0.0
        %1216 = vmatpush1.xpose.msra.mxu0 0.0
        %1217 = vmatprep.subr.mxu0 0.0
        %1218 = vmatpush1.xpose.msra.mxu0 0.0
        %1219 = vmatprep.subr.mxu0 0.0
        %1220 = vmatpush1.xpose.msra.mxu0 0.0
        %1221 = vmatprep.subr.mxu0 0.0
        %1222 = vmatpush1.xpose.msra.mxu0 0.0
        %1223 = vmatprep.subr.mxu0 0.0
        %1224 = vmatpush1.xpose.msra.mxu0 0.0
        %1225 = vmatprep.subr.mxu0 0.0
        %1226 = vmatpush1.xpose.msra.mxu0 0.0
        %1227 = vmatprep.subr.mxu0 0.0
        %1228 = vmatpush1.xpose.msra.mxu0 0.0
        %1229 = vmatprep.subr.mxu0 0.0
        %1230 = vmatpush1.xpose.msra.mxu0 0.0
        %1231 = vmatprep.subr.mxu0 0.0
        %1232 = vmatpush1.xpose.msra.mxu0 0.0
        %1233 = vmatprep.subr.mxu0 0.0
        %1234 = vmatpush1.xpose.msra.mxu0 0.0
        %1235 = vmatprep.subr.mxu0 0.0
        %1236 = vmatpush1.xpose.msra.mxu0 0.0
        %1237 = vmatprep.subr.mxu0 0.0
        %1238 = vmatpush1.xpose.msra.mxu0 0.0
        %1239 = vmatprep.subr.mxu0 0.0
        %1240 = vmatpush1.xpose.msra.mxu0 0.0
        %1241 = vmatprep.subr.mxu0 0.0
        %1242 = vmatpush1.xpose.msra.mxu0 0.0
        %1243 = vmatprep.mubr.f32.mxu0 0.0
        %1244 = vmatmul.mubr.f32.gmra.mrb[0].mxu0 %v1175
        %v1245 = vpop.f32.mrb[0].mxu0
        %v1246 = vadd.f32 0.0, %v1245
        %v1247 = vpop.f32.mrb[0].mxu0
        %1248 = vdwg.mxu0
        %v1249 = vmul.f32 %v1246, 0.35355338
        %v1250 = vadd.f32 %v1249, %v1103
        %v1251 = vsel %vm1023, %v1250, -inf
        %1252 = vmax.xlane.f32.xlu0 %v1251
        %v1253 = vpop.xlane.xlu0 %1252
        %v1254 = vsub.f32 %v1250, %v1253
        %v1255 = vmul.f32 %v1254, 1.442695
        %v1256 = vpow.pop %v1255
        %v1257 = vsel %vm1023, %v1256, 0.0
        %1258 = vadd.xlane.f32.xlu0 %v1257
        %v1259 = vpop.xlane.xlu0 %1258
        %v1260 = vrcp.pop %v1259
        %v1261 = vmul.f32 %v1256, %v1260
        %v1262 = vpack.c.bf16 %v1261, %v1261
        %1263 = vrot.lane.b32.xlu0 %v1118, 56
        %v1264 = vpop.permute.xlu0 %1263
        %v1266 = vsel %vm1023, %v1262, 0
        %v1269 = vsel %vm1125, %v1264, 0
        %1271 = vmatprep.subr.bf16.mxu0 0
        %1272 = vmatpush1.bf16.msra.mxu0 %v1269
        %1273 = vmatprep.subr.bf16.mxu0 0
        %1274 = vmatpush1.bf16.msra.mxu0 0
        %1275 = vmatprep.subr.bf16.mxu0 0
        %1276 = vmatpush1.bf16.msra.mxu0 0
        %1277 = vmatprep.subr.bf16.mxu0 0
        %1278 = vmatpush1.bf16.msra.mxu0 0
        %1279 = vmatprep.subr.bf16.mxu0 0
        %1280 = vmatpush1.bf16.msra.mxu0 0
        %1281 = vmatprep.subr.bf16.mxu0 0
        %1282 = vmatpush1.bf16.msra.mxu0 0
        %1283 = vmatprep.subr.bf16.mxu0 0
        %1284 = vmatpush1.bf16.msra.mxu0 0
        %1285 = vmatprep.subr.bf16.mxu0 0
        %1286 = vmatpush1.bf16.msra.mxu0 0
        %1287 = vmatprep.subr.bf16.mxu0 0
        %1288 = vmatpush1.bf16.msra.mxu0 0
        %1289 = vmatprep.subr.bf16.mxu0 0
        %1290 = vmatpush1.bf16.msra.mxu0 0
        %1291 = vmatprep.subr.bf16.mxu0 0
        %1292 = vmatpush1.bf16.msra.mxu0 0
        %1293 = vmatprep.subr.bf16.mxu0 0
        %1294 = vmatpush1.bf16.msra.mxu0 0
        %1295 = vmatprep.subr.bf16.mxu0 0
        %1296 = vmatpush1.bf16.msra.mxu0 0
        %1297 = vmatprep.subr.bf16.mxu0 0
        %1298 = vmatpush1.bf16.msra.mxu0 0
        %1299 = vmatprep.subr.bf16.mxu0 0
        %1300 = vmatpush1.bf16.msra.mxu0 0
        %1301 = vmatprep.subr.bf16.mxu0 0
        %1302 = vmatpush1.bf16.msra.mxu0 0
        %1303 = vmatprep.mubr.bf16.mxu0 0
        %1304 = vmatmul.mubr.bf16.gmra.mrb[0].mxu0 %v1266
        %v1305 = vpop.f32.mrb[0].mxu0
        %v1306 = vadd.f32 0.0, %v1305
        %v1307 = vpop.f32.mrb[0].mxu0
        %v1308 = vpop.f32.mrb[0].mxu0
        %v1309 = vpop.f32.mrb[0].mxu0
        %1310 = vdwg.mxu0
        %v1311 = vpack.c.bf16 %v1306, %v1306
        %v1312 = vld [vmem:[%s892 + $0x4] sm:$0xf]
        %v1314 = vsel %vm1023, %v1311, 0
        %v1317 = vsel %vm1125, %v1312, 0
        %1319 = vmatprep.subr.bf16.mxu0 0
        %1320 = vmatpush1.bf16.msra.mxu0 %v1317
        %1321 = vmatprep.subr.bf16.mxu0 0
        %1322 = vmatpush1.bf16.msra.mxu0 0
        %1323 = vmatprep.subr.bf16.mxu0 0
        %1324 = vmatpush1.bf16.msra.mxu0 0
        %1325 = vmatprep.subr.bf16.mxu0 0
        %1326 = vmatpush1.bf16.msra.mxu0 0
        %1327 = vmatprep.subr.bf16.mxu0 0
        %1328 = vmatpush1.bf16.msra.mxu0 0
        %1329 = vmatprep.subr.bf16.mxu0 0
        %1330 = vmatpush1.bf16.msra.mxu0 0
        %1331 = vmatprep.subr.bf16.mxu0 0
        %1332 = vmatpush1.bf16.msra.mxu0 0
        %1333 = vmatprep.subr.bf16.mxu0 0
        %1334 = vmatpush1.bf16.msra.mxu0 0
        %1335 = vmatprep.subr.bf16.mxu0 0
        %1336 = vmatpush1.bf16.msra.mxu0 0
        %1337 = vmatprep.subr.bf16.mxu0 0
        %1338 = vmatpush1.bf16.msra.mxu0 0
        %1339 = vmatprep.subr.bf16.mxu0 0
        %1340 = vmatpush1.bf16.msra.mxu0 0
        %1341 = vmatprep.subr.bf16.mxu0 0
        %1342 = vmatpush1.bf16.msra.mxu0 0
        %1343 = vmatprep.subr.bf16.mxu0 0
        %1344 = vmatpush1.bf16.msra.mxu0 0
        %1345 = vmatprep.subr.bf16.mxu0 0
        %1346 = vmatpush1.bf16.msra.mxu0 0
        %1347 = vmatprep.subr.bf16.mxu0 0
        %1348 = vmatpush1.bf16.msra.mxu0 0
        %1349 = vmatprep.subr.bf16.mxu0 0
        %1350 = vmatpush1.bf16.msra.mxu0 0
        %1351 = vmatprep.mubr.bf16.mxu0 0
        %1352 = vmatmul.mubr.bf16.gmra.mrb[0].mxu0 %v1314
        %v1353 = vpop.f32.mrb[0].mxu0
        %v1354 = vadd.f32 0.0, %v1353
        %v1355 = vpop.f32.mrb[0].mxu0
        %v1356 = vpop.f32.mrb[0].mxu0
        %v1357 = vpop.f32.mrb[0].mxu0
        %1358 = vdwg.mxu0
        %v1360 = vsel %vm1023, %v1169, 0
        %v1363 = vsel %vm1125, %v1170, 0
        %1365 = vmatprep.subr.bf16.mxu0 0
        %1366 = vmatpush1.bf16.msra.mxu0 %v1363
        %1367 = vmatprep.subr.bf16.mxu0 0
        %1368 = vmatpush1.bf16.msra.mxu0 0
        %1369 = vmatprep.subr.bf16.mxu0 0
        %1370 = vmatpush1.bf16.msra.mxu0 0
        %1371 = vmatprep.subr.bf16.mxu0 0
        %1372 = vmatpush1.bf16.msra.mxu0 0
        %1373 = vmatprep.subr.bf16.mxu0 0
        %1374 = vmatpush1.bf16.msra.mxu0 0
        %1375 = vmatprep.subr.bf16.mxu0 0
        %1376 = vmatpush1.bf16.msra.mxu0 0
        %1377 = vmatprep.subr.bf16.mxu0 0
        %1378 = vmatpush1.bf16.msra.mxu0 0
        %1379 = vmatprep.subr.bf16.mxu0 0
        %1380 = vmatpush1.bf16.msra.mxu0 0
        %1381 = vmatprep.subr.bf16.mxu0 0
        %1382 = vmatpush1.bf16.msra.mxu0 0
        %1383 = vmatprep.subr.bf16.mxu0 0
        %1384 = vmatpush1.bf16.msra.mxu0 0
        %1385 = vmatprep.subr.bf16.mxu0 0
        %1386 = vmatpush1.bf16.msra.mxu0 0
        %1387 = vmatprep.subr.bf16.mxu0 0
        %1388 = vmatpush1.bf16.msra.mxu0 0
        %1389 = vmatprep.subr.bf16.mxu0 0
        %1390 = vmatpush1.bf16.msra.mxu0 0
        %1391 = vmatprep.subr.bf16.mxu0 0
        %1392 = vmatpush1.bf16.msra.mxu0 0
        %1393 = vmatprep.subr.bf16.mxu0 0
        %1394 = vmatpush1.bf16.msra.mxu0 0
        %1395 = vmatprep.subr.bf16.mxu0 0
        %1396 = vmatpush1.bf16.msra.mxu0 0
        %1397 = vmatprep.mubr.bf16.mxu0 0
        %1398 = vmatmul.mubr.bf16.gmra.mrb[0].mxu0 %v1360
        %v1399 = vpop.f32.mrb[0].mxu0
        %v1400 = vadd.f32 %v1354, %v1399
        %v1401 = vpop.f32.mrb[0].mxu0
        %v1402 = vpop.f32.mrb[0].mxu0
        %v1403 = vpop.f32.mrb[0].mxu0
        %1404 = vdwg.mxu0
        %1405 = vrot.lane.b32.xlu0 %v1014, 112
        %v1406 = vpop.permute.xlu0 %1405
        %1407 = vrot.lane.b32.xlu0 %v1014, 80
        %v1408 = vpop.permute.xlu0 %1407
        %v1409 = vsel %vm1023, %v1406, 0
        %v1411 = vsel %vm1023, %v1408, 0
        %1413 = vmatprep.subr.mxu0 0.0
        %1414 = vmatpush1.xpose.msra.mxu0 %v1411
        %1415 = vmatprep.subr.mxu0 0.0
        %1416 = vmatpush1.xpose.msra.mxu0 0.0
        %1417 = vmatprep.subr.mxu0 0.0
        %1418 = vmatpush1.xpose.msra.mxu0 0.0
        %1419 = vmatprep.subr.mxu0 0.0
        %1420 = vmatpush1.xpose.msra.mxu0 0.0
        %1421 = vmatprep.subr.mxu0 0.0
        %1422 = vmatpush1.xpose.msra.mxu0 0.0
        %1423 = vmatprep.subr.mxu0 0.0
        %1424 = vmatpush1.xpose.msra.mxu0 0.0
        %1425 = vmatprep.subr.mxu0 0.0
        %1426 = vmatpush1.xpose.msra.mxu0 0.0
        %1427 = vmatprep.subr.mxu0 0.0
        %1428 = vmatpush1.xpose.msra.mxu0 0.0
        %1429 = vmatprep.subr.mxu0 0.0
        %1430 = vmatpush1.xpose.msra.mxu0 0.0
        %1431 = vmatprep.subr.mxu0 0.0
        %1432 = vmatpush1.xpose.msra.mxu0 0.0
        %1433 = vmatprep.subr.mxu0 0.0
        %1434 = vmatpush1.xpose.msra.mxu0 0.0
        %1435 = vmatprep.subr.mxu0 0.0
        %1436 = vmatpush1.xpose.msra.mxu0 0.0
        %1437 = vmatprep.subr.mxu0 0.0
        %1438 = vmatpush1.xpose.msra.mxu0 0.0
        %1439 = vmatprep.subr.mxu0 0.0
        %1440 = vmatpush1.xpose.msra.mxu0 0.0
        %1441 = vmatprep.subr.mxu0 0.0
        %1442 = vmatpush1.xpose.msra.mxu0 0.0
        %1443 = vmatprep.subr.mxu0 0.0
        %1444 = vmatpush1.xpose.msra.mxu0 0.0
        %1445 = vmatprep.subr.mxu0 0.0
        %1446 = vmatpush1.xpose.msra.mxu0 0.0
        %1447 = vmatprep.subr.mxu0 0.0
        %1448 = vmatpush1.xpose.msra.mxu0 0.0
        %1449 = vmatprep.subr.mxu0 0.0
        %1450 = vmatpush1.xpose.msra.mxu0 0.0
        %1451 = vmatprep.subr.mxu0 0.0
        %1452 = vmatpush1.xpose.msra.mxu0 0.0
        %1453 = vmatprep.subr.mxu0 0.0
        %1454 = vmatpush1.xpose.msra.mxu0 0.0
        %1455 = vmatprep.subr.mxu0 0.0
        %1456 = vmatpush1.xpose.msra.mxu0 0.0
        %1457 = vmatprep.subr.mxu0 0.0
        %1458 = vmatpush1.xpose.msra.mxu0 0.0
        %1459 = vmatprep.subr.mxu0 0.0
        %1460 = vmatpush1.xpose.msra.mxu0 0.0
        %1461 = vmatprep.subr.mxu0 0.0
        %1462 = vmatpush1.xpose.msra.mxu0 0.0
        %1463 = vmatprep.subr.mxu0 0.0
        %1464 = vmatpush1.xpose.msra.mxu0 0.0
        %1465 = vmatprep.subr.mxu0 0.0
        %1466 = vmatpush1.xpose.msra.mxu0 0.0
        %1467 = vmatprep.subr.mxu0 0.0
        %1468 = vmatpush1.xpose.msra.mxu0 0.0
        %1469 = vmatprep.subr.mxu0 0.0
        %1470 = vmatpush1.xpose.msra.mxu0 0.0
        %1471 = vmatprep.subr.mxu0 0.0
        %1472 = vmatpush1.xpose.msra.mxu0 0.0
        %1473 = vmatprep.subr.mxu0 0.0
        %1474 = vmatpush1.xpose.msra.mxu0 0.0
        %1475 = vmatprep.subr.mxu0 0.0
        %1476 = vmatpush1.xpose.msra.mxu0 0.0
        %1477 = vmatprep.mubr.f32.mxu0 0.0
        %1478 = vmatmul.mubr.f32.gmra.mrb[0].mxu0 %v1409
        %v1479 = vpop.f32.mrb[0].mxu0
        %v1480 = vadd.f32 0.0, %v1479
        %v1481 = vpop.f32.mrb[0].mxu0
        %1482 = vdwg.mxu0
        %v1483 = vmul.f32 %v1480, 0.35355338
        %v1484 = vadd.f32 %v1483, %v1103
        %v1485 = vsel %vm1023, %v1484, -inf
        %1486 = vmax.xlane.f32.xlu0 %v1485
        %v1487 = vpop.xlane.xlu0 %1486
        %v1488 = vsub.f32 %v1484, %v1487
        %v1489 = vmul.f32 %v1488, 1.442695
        %v1490 = vpow.pop %v1489
        %v1491 = vsel %vm1023, %v1490, 0.0
        %1492 = vadd.xlane.f32.xlu0 %v1491
        %v1493 = vpop.xlane.xlu0 %1492
        %v1494 = vrcp.pop %v1493
        %v1495 = vmul.f32 %v1490, %v1494
        %v1496 = vpack.c.bf16 %v1495, %v1495
        %1497 = vrot.lane.b32.xlu0 %v1118, 48
        %v1498 = vpop.permute.xlu0 %1497
        %v1500 = vsel %vm1023, %v1496, 0
        %v1503 = vsel %vm1125, %v1498, 0
        %1505 = vmatprep.subr.bf16.mxu0 0
        %1506 = vmatpush1.bf16.msra.mxu0 %v1503
        %1507 = vmatprep.subr.bf16.mxu0 0
        %1508 = vmatpush1.bf16.msra.mxu0 0
        %1509 = vmatprep.subr.bf16.mxu0 0
        %1510 = vmatpush1.bf16.msra.mxu0 0
        %1511 = vmatprep.subr.bf16.mxu0 0
        %1512 = vmatpush1.bf16.msra.mxu0 0
        %1513 = vmatprep.subr.bf16.mxu0 0
        %1514 = vmatpush1.bf16.msra.mxu0 0
        %1515 = vmatprep.subr.bf16.mxu0 0
        %1516 = vmatpush1.bf16.msra.mxu0 0
        %1517 = vmatprep.subr.bf16.mxu0 0
        %1518 = vmatpush1.bf16.msra.mxu0 0
        %1519 = vmatprep.subr.bf16.mxu0 0
        %1520 = vmatpush1.bf16.msra.mxu0 0
        %1521 = vmatprep.subr.bf16.mxu0 0
        %1522 = vmatpush1.bf16.msra.mxu0 0
        %1523 = vmatprep.subr.bf16.mxu0 0
        %1524 = vmatpush1.bf16.msra.mxu0 0
        %1525 = vmatprep.subr.bf16.mxu0 0
        %1526 = vmatpush1.bf16.msra.mxu0 0
        %1527 = vmatprep.subr.bf16.mxu0 0
        %1528 = vmatpush1.bf16.msra.mxu0 0
        %1529 = vmatprep.subr.bf16.mxu0 0
        %1530 = vmatpush1.bf16.msra.mxu0 0
        %1531 = vmatprep.subr.bf16.mxu0 0
        %1532 = vmatpush1.bf16.msra.mxu0 0
        %1533 = vmatprep.subr.bf16.mxu0 0
        %1534 = vmatpush1.bf16.msra.mxu0 0
        %1535 = vmatprep.subr.bf16.mxu0 0
        %1536 = vmatpush1.bf16.msra.mxu0 0
        %1537 = vmatprep.mubr.bf16.mxu0 0
        %1538 = vmatmul.mubr.bf16.gmra.mrb[0].mxu0 %v1500
        %v1539 = vpop.f32.mrb[0].mxu0
        %v1540 = vadd.f32 0.0, %v1539
        %v1541 = vpop.f32.mrb[0].mxu0
        %v1542 = vpop.f32.mrb[0].mxu0
        %v1543 = vpop.f32.mrb[0].mxu0
        %1544 = vdwg.mxu0
        %v1545 = vpack.c.bf16 %v1540, %v1540
        %v1546 = vld [vmem:[%s892 + $0x8] sm:$0xf]
        %v1548 = vsel %vm1023, %v1545, 0
        %v1551 = vsel %vm1125, %v1546, 0
        %1553 = vmatprep.subr.bf16.mxu0 0
        %1554 = vmatpush1.bf16.msra.mxu0 %v1551
        %1555 = vmatprep.subr.bf16.mxu0 0
        %1556 = vmatpush1.bf16.msra.mxu0 0
        %1557 = vmatprep.subr.bf16.mxu0 0
        %1558 = vmatpush1.bf16.msra.mxu0 0
        %1559 = vmatprep.subr.bf16.mxu0 0
        %1560 = vmatpush1.bf16.msra.mxu0 0
        %1561 = vmatprep.subr.bf16.mxu0 0
        %1562 = vmatpush1.bf16.msra.mxu0 0
        %1563 = vmatprep.subr.bf16.mxu0 0
        %1564 = vmatpush1.bf16.msra.mxu0 0
        %1565 = vmatprep.subr.bf16.mxu0 0
        %1566 = vmatpush1.bf16.msra.mxu0 0
        %1567 = vmatprep.subr.bf16.mxu0 0
        %1568 = vmatpush1.bf16.msra.mxu0 0
        %1569 = vmatprep.subr.bf16.mxu0 0
        %1570 = vmatpush1.bf16.msra.mxu0 0
        %1571 = vmatprep.subr.bf16.mxu0 0
        %1572 = vmatpush1.bf16.msra.mxu0 0
        %1573 = vmatprep.subr.bf16.mxu0 0
        %1574 = vmatpush1.bf16.msra.mxu0 0
        %1575 = vmatprep.subr.bf16.mxu0 0
        %1576 = vmatpush1.bf16.msra.mxu0 0
        %1577 = vmatprep.subr.bf16.mxu0 0
        %1578 = vmatpush1.bf16.msra.mxu0 0
        %1579 = vmatprep.subr.bf16.mxu0 0
        %1580 = vmatpush1.bf16.msra.mxu0 0
        %1581 = vmatprep.subr.bf16.mxu0 0
        %1582 = vmatpush1.bf16.msra.mxu0 0
        %1583 = vmatprep.subr.bf16.mxu0 0
        %1584 = vmatpush1.bf16.msra.mxu0 0
        %1585 = vmatprep.mubr.bf16.mxu0 0
        %1586 = vmatmul.mubr.bf16.gmra.mrb[0].mxu0 %v1548
        %v1587 = vpop.f32.mrb[0].mxu0
        %v1588 = vadd.f32 0.0, %v1587
        %v1589 = vpop.f32.mrb[0].mxu0
        %v1590 = vpop.f32.mrb[0].mxu0
        %v1591 = vpop.f32.mrb[0].mxu0
        %1592 = vdwg.mxu0
        %v1593 = vadd.f32 %v1400, %v1588
        %1594 = vrot.lane.b32.xlu0 %v1014, 104
        %v1595 = vpop.permute.xlu0 %1594
        %1596 = vrot.lane.b32.xlu0 %v1014, 72
        %v1597 = vpop.permute.xlu0 %1596
        %v1598 = vsel %vm1023, %v1595, 0
        %v1600 = vsel %vm1023, %v1597, 0
        %1602 = vmatprep.subr.mxu0 0.0
        %1603 = vmatpush1.xpose.msra.mxu0 %v1600
        %1604 = vmatprep.subr.mxu0 0.0
        %1605 = vmatpush1.xpose.msra.mxu0 0.0
        %1606 = vmatprep.subr.mxu0 0.0
        %1607 = vmatpush1.xpose.msra.mxu0 0.0
        %1608 = vmatprep.subr.mxu0 0.0
        %1609 = vmatpush1.xpose.msra.mxu0 0.0
        %1610 = vmatprep.subr.mxu0 0.0
        %1611 = vmatpush1.xpose.msra.mxu0 0.0
        %1612 = vmatprep.subr.mxu0 0.0
        %1613 = vmatpush1.xpose.msra.mxu0 0.0
        %1614 = vmatprep.subr.mxu0 0.0
        %1615 = vmatpush1.xpose.msra.mxu0 0.0
        %1616 = vmatprep.subr.mxu0 0.0
        %1617 = vmatpush1.xpose.msra.mxu0 0.0
        %1618 = vmatprep.subr.mxu0 0.0
        %1619 = vmatpush1.xpose.msra.mxu0 0.0
        %1620 = vmatprep.subr.mxu0 0.0
        %1621 = vmatpush1.xpose.msra.mxu0 0.0
        %1622 = vmatprep.subr.mxu0 0.0
        %1623 = vmatpush1.xpose.msra.mxu0 0.0
        %1624 = vmatprep.subr.mxu0 0.0
        %1625 = vmatpush1.xpose.msra.mxu0 0.0
        %1626 = vmatprep.subr.mxu0 0.0
        %1627 = vmatpush1.xpose.msra.mxu0 0.0
        %1628 = vmatprep.subr.mxu0 0.0
        %1629 = vmatpush1.xpose.msra.mxu0 0.0
        %1630 = vmatprep.subr.mxu0 0.0
        %1631 = vmatpush1.xpose.msra.mxu0 0.0
        %1632 = vmatprep.subr.mxu0 0.0
        %1633 = vmatpush1.xpose.msra.mxu0 0.0
        %1634 = vmatprep.subr.mxu0 0.0
        %1635 = vmatpush1.xpose.msra.mxu0 0.0
        %1636 = vmatprep.subr.mxu0 0.0
        %1637 = vmatpush1.xpose.msra.mxu0 0.0
        %1638 = vmatprep.subr.mxu0 0.0
        %1639 = vmatpush1.xpose.msra.mxu0 0.0
        %1640 = vmatprep.subr.mxu0 0.0
        %1641 = vmatpush1.xpose.msra.mxu0 0.0
        %1642 = vmatprep.subr.mxu0 0.0
        %1643 = vmatpush1.xpose.msra.mxu0 0.0
        %1644 = vmatprep.subr.mxu0 0.0
        %1645 = vmatpush1.xpose.msra.mxu0 0.0
        %1646 = vmatprep.subr.mxu0 0.0
        %1647 = vmatpush1.xpose.msra.mxu0 0.0
        %1648 = vmatprep.subr.mxu0 0.0
        %1649 = vmatpush1.xpose.msra.mxu0 0.0
        %1650 = vmatprep.subr.mxu0 0.0
        %1651 = vmatpush1.xpose.msra.mxu0 0.0
        %1652 = vmatprep.subr.mxu0 0.0
        %1653 = vmatpush1.xpose.msra.mxu0 0.0
        %1654 = vmatprep.subr.mxu0 0.0
        %1655 = vmatpush1.xpose.msra.mxu0 0.0
        %1656 = vmatprep.subr.mxu0 0.0
        %1657 = vmatpush1.xpose.msra.mxu0 0.0
        %1658 = vmatprep.subr.mxu0 0.0
        %1659 = vmatpush1.xpose.msra.mxu0 0.0
        %1660 = vmatprep.subr.mxu0 0.0
        %1661 = vmatpush1.xpose.msra.mxu0 0.0
        %1662 = vmatprep.subr.mxu0 0.0
        %1663 = vmatpush1.xpose.msra.mxu0 0.0
        %1664 = vmatprep.subr.mxu0 0.0
        %1665 = vmatpush1.xpose.msra.mxu0 0.0
        %1666 = vmatprep.mubr.f32.mxu0 0.0
        %1667 = vmatmul.mubr.f32.gmra.mrb[0].mxu0 %v1598
        %v1668 = vpop.f32.mrb[0].mxu0
        %v1669 = vadd.f32 0.0, %v1668
        %v1670 = vpop.f32.mrb[0].mxu0
        %1671 = vdwg.mxu0
        %v1672 = vmul.f32 %v1669, 0.35355338
        %v1673 = vadd.f32 %v1672, %v1103
        %v1674 = vsel %vm1023, %v1673, -inf
        %1675 = vmax.xlane.f32.xlu0 %v1674
        %v1676 = vpop.xlane.xlu0 %1675
        %v1677 = vsub.f32 %v1673, %v1676
        %v1678 = vmul.f32 %v1677, 1.442695
        %v1679 = vpow.pop %v1678
        %v1680 = vsel %vm1023, %v1679, 0.0
        %1681 = vadd.xlane.f32.xlu0 %v1680
        %v1682 = vpop.xlane.xlu0 %1681
        %v1683 = vrcp.pop %v1682
        %v1684 = vmul.f32 %v1679, %v1683
        %v1685 = vpack.c.bf16 %v1684, %v1684
        %1686 = vrot.lane.b32.xlu0 %v1118, 40
        %v1687 = vpop.permute.xlu0 %1686
        %v1689 = vsel %vm1023, %v1685, 0
        %v1692 = vsel %vm1125, %v1687, 0
        %1694 = vmatprep.subr.bf16.mxu0 0
        %1695 = vmatpush1.bf16.msra.mxu0 %v1692
        %1696 = vmatprep.subr.bf16.mxu0 0
        %1697 = vmatpush1.bf16.msra.mxu0 0
        %1698 = vmatprep.subr.bf16.mxu0 0
        %1699 = vmatpush1.bf16.msra.mxu0 0
        %1700 = vmatprep.subr.bf16.mxu0 0
        %1701 = vmatpush1.bf16.msra.mxu0 0
        %1702 = vmatprep.subr.bf16.mxu0 0
        %1703 = vmatpush1.bf16.msra.mxu0 0
        %1704 = vmatprep.subr.bf16.mxu0 0
        %1705 = vmatpush1.bf16.msra.mxu0 0
        %1706 = vmatprep.subr.bf16.mxu0 0
        %1707 = vmatpush1.bf16.msra.mxu0 0
        %1708 = vmatprep.subr.bf16.mxu0 0
        %1709 = vmatpush1.bf16.msra.mxu0 0
        %1710 = vmatprep.subr.bf16.mxu0 0
        %1711 = vmatpush1.bf16.msra.mxu0 0
        %1712 = vmatprep.subr.bf16.mxu0 0
        %1713 = vmatpush1.bf16.msra.mxu0 0
        %1714 = vmatprep.subr.bf16.mxu0 0
        %1715 = vmatpush1.bf16.msra.mxu0 0
        %1716 = vmatprep.subr.bf16.mxu0 0
        %1717 = vmatpush1.bf16.msra.mxu0 0
        %1718 = vmatprep.subr.bf16.mxu0 0
        %1719 = vmatpush1.bf16.msra.mxu0 0
        %1720 = vmatprep.subr.bf16.mxu0 0
        %1721 = vmatpush1.bf16.msra.mxu0 0
        %1722 = vmatprep.subr.bf16.mxu0 0
        %1723 = vmatpush1.bf16.msra.mxu0 0
        %1724 = vmatprep.subr.bf16.mxu0 0
        %1725 = vmatpush1.bf16.msra.mxu0 0
        %1726 = vmatprep.mubr.bf16.mxu0 0
        %1727 = vmatmul.mubr.bf16.gmra.mrb[0].mxu0 %v1689
        %v1728 = vpop.f32.mrb[0].mxu0
        %v1729 = vadd.f32 0.0, %v1728
        %v1730 = vpop.f32.mrb[0].mxu0
        %v1731 = vpop.f32.mrb[0].mxu0
        %v1732 = vpop.f32.mrb[0].mxu0
        %1733 = vdwg.mxu0
        %v1734 = vpack.c.bf16 %v1729, %v1729
        %v1735 = vld [vmem:[%s892 + $0xc] sm:$0xf]
        %v1737 = vsel %vm1023, %v1734, 0
        %v1740 = vsel %vm1125, %v1735, 0
        %1742 = vmatprep.subr.bf16.mxu0 0
        %1743 = vmatpush1.bf16.msra.mxu0 %v1740
        %1744 = vmatprep.subr.bf16.mxu0 0
        %1745 = vmatpush1.bf16.msra.mxu0 0
        %1746 = vmatprep.subr.bf16.mxu0 0
        %1747 = vmatpush1.bf16.msra.mxu0 0
        %1748 = vmatprep.subr.bf16.mxu0 0
        %1749 = vmatpush1.bf16.msra.mxu0 0
        %1750 = vmatprep.subr.bf16.mxu0 0
        %1751 = vmatpush1.bf16.msra.mxu0 0
        %1752 = vmatprep.subr.bf16.mxu0 0
        %1753 = vmatpush1.bf16.msra.mxu0 0
        %1754 = vmatprep.subr.bf16.mxu0 0
        %1755 = vmatpush1.bf16.msra.mxu0 0
        %1756 = vmatprep.subr.bf16.mxu0 0
        %1757 = vmatpush1.bf16.msra.mxu0 0
        %1758 = vmatprep.subr.bf16.mxu0 0
        %1759 = vmatpush1.bf16.msra.mxu0 0
        %1760 = vmatprep.subr.bf16.mxu0 0
        %1761 = vmatpush1.bf16.msra.mxu0 0
        %1762 = vmatprep.subr.bf16.mxu0 0
        %1763 = vmatpush1.bf16.msra.mxu0 0
        %1764 = vmatprep.subr.bf16.mxu0 0
        %1765 = vmatpush1.bf16.msra.mxu0 0
        %1766 = vmatprep.subr.bf16.mxu0 0
        %1767 = vmatpush1.bf16.msra.mxu0 0
        %1768 = vmatprep.subr.bf16.mxu0 0
        %1769 = vmatpush1.bf16.msra.mxu0 0
        %1770 = vmatprep.subr.bf16.mxu0 0
        %1771 = vmatpush1.bf16.msra.mxu0 0
        %1772 = vmatprep.subr.bf16.mxu0 0
        %1773 = vmatpush1.bf16.msra.mxu0 0
        %1774 = vmatprep.mubr.bf16.mxu0 0
        %1775 = vmatmul.mubr.bf16.gmra.mrb[0].mxu0 %v1737
        %v1776 = vpop.f32.mrb[0].mxu0
        %v1777 = vadd.f32 0.0, %v1776
        %v1778 = vpop.f32.mrb[0].mxu0
        %v1779 = vpop.f32.mrb[0].mxu0
        %v1780 = vpop.f32.mrb[0].mxu0
        %1781 = vdwg.mxu0
        %v1782 = vadd.f32 %v1593, %v1777
        %v1783 = vld [vmem:[%s741] sm:$0x1]
        %v1785 = vlaneseq
        %v1786 = vshrl.u32 %v1785, 7
        %v1787 = vsub.s32 0, %v1786
        %v1788 = vrot.slane %v1783, %v1787
        %v1790 = vadd.f32 %v1782, %v1788
        %v1791 = vadd.f32 %v1790, %v950
        %v1792 = vld [vmem:[%s749] sm:$0x1]
        %v1793 = vld [vmem:[%s757] sm:$0x1]
        %v1794 = vsel %vm975, %v1791, 0.0
        %1795 = vadd.xlane.f32.xlu0 %v1794
        %v1796 = vpop.xlane.xlu0 %1795
        %v1797 = vrcp.pop 32.0
        %v1798 = vmul.f32 %v1796, %v1797
        %v1799 = vsub.f32 %v1791, %v1798
        %v1800 = vmul.f32 %v1799, %v1799
        %v1801 = vsel %vm975, %v1800, 0.0
        %1802 = vadd.xlane.f32.xlu0 %v1801
        %v1803 = vpop.xlane.xlu0 %1802
        %v1804 = vmul.f32 %v1803, %v1797
        %v1805 = vadd.f32 %v1804, 1e-12
        %v1806 = vrsqrt.pop %v1805
        %v1807 = vmul.f32 %v1799, %v1806
        %v1809 = vlaneseq
        %v1810 = vshrl.u32 %v1809, 7
        %v1811 = vsub.s32 0, %v1810
        %v1812 = vrot.slane %v1792, %v1811
        %v1814 = vmul.f32 %v1807, %v1812
        %v1816 = vlaneseq
        %v1817 = vshrl.u32 %v1816, 7
        %v1818 = vsub.s32 0, %v1817
        %v1819 = vrot.slane %v1793, %v1818
        %v1821 = vadd.f32 %v1814, %v1819
        %v1822 = vpack.c.bf16 %v1821, %v1821
        %v1823 = vld [vmem:[%s897] sm:$0xf]
        %v1824 = vld [vmem:[%s897 + $0x4] sm:$0xf]
        %v1825 = vld [vmem:[%s897 + $0x8] sm:$0xf]
        %v1826 = vld [vmem:[%s897 + $0xc] sm:$0xf]
        %v1827 = vld [vmem:[%s765] sm:$0x1]
        %v1829 = vlaneseq
        %v1830 = vshrl.u32 %v1829, 7
        %v1831 = vsub.s32 0, %v1830
        %v1832 = vrot.slane %v1827, %v1831
        %v1838 = vunpack.c.l.b16 %v1823
        %v1839 = vunpack.c.l.b16 %v1824
        %v1840 = vunpack.c.l.b16 %v1825
        %v1841 = vunpack.c.l.b16 %v1826
        %v1842 = vpack.c.b16 %v1839, %v1838
        %v1843 = vpack.c.b16 %v1841, %v1840
        %v1847 = vsel %vm975, %v1822, 0
        %1849 = vmatprep.subr.bf16.mxu0 0
        %1850 = vmatpush1.bf16.msra.mxu0 %v1842
        %1851 = vmatprep.subr.bf16.mxu0 0
        %1852 = vmatpush1.bf16.msra.mxu0 %v1843
        %1853 = vmatprep.subr.bf16.mxu0 0
        %1854 = vmatpush1.bf16.msra.mxu0 0
        %1855 = vmatprep.subr.bf16.mxu0 0
        %1856 = vmatpush1.bf16.msra.mxu0 0
        %1857 = vmatprep.subr.bf16.mxu0 0
        %1858 = vmatpush1.bf16.msra.mxu0 0
        %1859 = vmatprep.subr.bf16.mxu0 0
        %1860 = vmatpush1.bf16.msra.mxu0 0
        %1861 = vmatprep.subr.bf16.mxu0 0
        %1862 = vmatpush1.bf16.msra.mxu0 0
        %1863 = vmatprep.subr.bf16.mxu0 0
        %1864 = vmatpush1.bf16.msra.mxu0 0
        %1865 = vmatprep.subr.bf16.mxu0 0
        %1866 = vmatpush1.bf16.msra.mxu0 0
        %1867 = vmatprep.subr.bf16.mxu0 0
        %1868 = vmatpush1.bf16.msra.mxu0 0
        %1869 = vmatprep.subr.bf16.mxu0 0
        %1870 = vmatpush1.bf16.msra.mxu0 0
        %1871 = vmatprep.subr.bf16.mxu0 0
        %1872 = vmatpush1.bf16.msra.mxu0 0
        %1873 = vmatprep.subr.bf16.mxu0 0
        %1874 = vmatpush1.bf16.msra.mxu0 0
        %1875 = vmatprep.subr.bf16.mxu0 0
        %1876 = vmatpush1.bf16.msra.mxu0 0
        %1877 = vmatprep.subr.bf16.mxu0 0
        %1878 = vmatpush1.bf16.msra.mxu0 0
        %1879 = vmatprep.subr.bf16.mxu0 0
        %1880 = vmatpush1.bf16.msra.mxu0 0
        %1881 = vmatprep.mubr.bf16.mxu0 0
        %1882 = vmatmul.mubr.bf16.gmra.mrb[0].mxu0 %v1847
        %v1883 = vpop.f32.mrb[0].mxu0
        %v1884 = vadd.f32 %v1832, %v1883
        %v1885 = vpop.f32.mrb[0].mxu0
        %v1886 = vpop.f32.mrb[0].mxu0
        %v1887 = vpop.f32.mrb[0].mxu0
        %1888 = vdwg.mxu0
        %v1889 = vmul.f32 %v1884, 0.5
        %v1890 = vmul.f32 %v1884, 0.044715
        %v1891 = vmul.f32 %v1890, %v1884
        %v1892 = vmul.f32 %v1891, %v1884
        %v1893 = vadd.f32 %v1884, %v1892
        %v1894 = vmul.f32 %v1893, 0.7978846
        %v1895 = vtanh.pop %v1894
        %v1896 = vadd.f32 %v1895, 1.0
        %v1897 = vmul.f32 %v1889, %v1896
        %v1898 = vpack.c.bf16 %v1897, %v1897
        %v1899 = vld [vmem:[%s902] sm:$0xf]
        %v1900 = vld [vmem:[%s902 + $0x4] sm:$0xf]
        %v1901 = vld [vmem:[%s902 + $0x8] sm:$0xf]
        %v1902 = vld [vmem:[%s902 + $0xc] sm:$0xf]
        %v1903 = vld [vmem:[%s902 + $0x10] sm:$0xf]
        %v1904 = vld [vmem:[%s902 + $0x14] sm:$0xf]
        %v1905 = vld [vmem:[%s902 + $0x18] sm:$0xf]
        %v1906 = vld [vmem:[%s902 + $0x1c] sm:$0xf]
        %v1907 = vld [vmem:[%s905] sm:$0x1]
        %v1909 = vlaneseq
        %v1910 = vshrl.u32 %v1909, 7
        %v1911 = vsub.s32 0, %v1910
        %v1912 = vrot.slane %v1907, %v1911
        %v1922 = vunpack.c.l.b16 %v1899
        %v1923 = vunpack.c.l.b16 %v1900
        %v1924 = vunpack.c.l.b16 %v1901
        %v1925 = vunpack.c.l.b16 %v1902
        %v1926 = vunpack.c.l.b16 %v1903
        %v1927 = vunpack.c.l.b16 %v1904
        %v1928 = vunpack.c.l.b16 %v1905
        %v1929 = vunpack.c.l.b16 %v1906
        %v1930 = vpack.c.b16 %v1923, %v1922
        %v1931 = vpack.c.b16 %v1925, %v1924
        %v1932 = vpack.c.b16 %v1927, %v1926
        %v1933 = vpack.c.b16 %v1929, %v1928
        %vm1938 = vcmask 523264
        %v1940 = vsel %vm1938, %v1898, 0
        %1942 = vmatprep.subr.bf16.mxu0 0
        %1943 = vmatpush1.bf16.msra.mxu0 %v1930
        %1944 = vmatprep.subr.bf16.mxu0 0
        %1945 = vmatpush1.bf16.msra.mxu0 %v1931
        %1946 = vmatprep.subr.bf16.mxu0 0
        %1947 = vmatpush1.bf16.msra.mxu0 %v1932
        %1948 = vmatprep.subr.bf16.mxu0 0
        %1949 = vmatpush1.bf16.msra.mxu0 %v1933
        %1950 = vmatprep.subr.bf16.mxu0 0
        %1951 = vmatpush1.bf16.msra.mxu0 0
        %1952 = vmatprep.subr.bf16.mxu0 0
        %1953 = vmatpush1.bf16.msra.mxu0 0
        %1954 = vmatprep.subr.bf16.mxu0 0
        %1955 = vmatpush1.bf16.msra.mxu0 0
        %1956 = vmatprep.subr.bf16.mxu0 0
        %1957 = vmatpush1.bf16.msra.mxu0 0
        %1958 = vmatprep.subr.bf16.mxu0 0
        %1959 = vmatpush1.bf16.msra.mxu0 0
        %1960 = vmatprep.subr.bf16.mxu0 0
        %1961 = vmatpush1.bf16.msra.mxu0 0
        %1962 = vmatprep.subr.bf16.mxu0 0
        %1963 = vmatpush1.bf16.msra.mxu0 0
        %1964 = vmatprep.subr.bf16.mxu0 0
        %1965 = vmatpush1.bf16.msra.mxu0 0
        %1966 = vmatprep.subr.bf16.mxu0 0
        %1967 = vmatpush1.bf16.msra.mxu0 0
        %1968 = vmatprep.subr.bf16.mxu0 0
        %1969 = vmatpush1.bf16.msra.mxu0 0
        %1970 = vmatprep.subr.bf16.mxu0 0
        %1971 = vmatpush1.bf16.msra.mxu0 0
        %1972 = vmatprep.subr.bf16.mxu0 0
        %1973 = vmatpush1.bf16.msra.mxu0 0
        %1974 = vmatprep.mubr.bf16.mxu0 0
        %1975 = vmatmul.mubr.bf16.gmra.mrb[0].mxu0 %v1940
        %v1976 = vpop.f32.mrb[0].mxu0
        %v1977 = vadd.f32 %v1912, %v1976
        %v1978 = vpop.f32.mrb[0].mxu0
        %v1979 = vpop.f32.mrb[0].mxu0
        %v1980 = vpop.f32.mrb[0].mxu0
        %1981 = vdwg.mxu0
        %v1982 = vadd.f32 %v1977, %v1821
        %v1983 = vld [vmem:[%s908] sm:$0x1]
        %v1984 = vld [vmem:[%s911] sm:$0x1]
        %v1985 = vsel %vm975, %v1982, 0.0
        %1986 = vadd.xlane.f32.xlu0 %v1985
        %v1987 = vpop.xlane.xlu0 %1986
        %v1988 = vmul.f32 %v1987, %v1797
        %v1989 = vsub.f32 %v1982, %v1988
        %v1990 = vmul.f32 %v1989, %v1989
        %v1991 = vsel %vm975, %v1990, 0.0
        %1992 = vadd.xlane.f32.xlu0 %v1991
        %v1993 = vpop.xlane.xlu0 %1992
        %v1994 = vmul.f32 %v1993, %v1797
        %v1995 = vadd.f32 %v1994, 1e-12
        %v1996 = vrsqrt.pop %v1995
        %v1997 = vmul.f32 %v1989, %v1996
        %v1999 = vlaneseq
        %v2000 = vshrl.u32 %v1999, 7
        %v2001 = vsub.s32 0, %v2000
        %v2002 = vrot.slane %v1983, %v2001
        %v2004 = vmul.f32 %v1997, %v2002
        %v2006 = vlaneseq
        %v2007 = vshrl.u32 %v2006, 7
        %v2008 = vsub.s32 0, %v2007
        %v2009 = vrot.slane %v1984, %v2008
        %v2011 = vadd.f32 %v2004, %v2009
        %2012 = vst.msk [vmem:[#allocation2] sm:$0xff] %vm975, %v2011
        %p2013 = scmp.eq.s32.totalorder %s47, 1
        // Predicated region
        $region121: #{tpu_custom_call.1} parent=91 // pred_check
          %p2014 = pneg %p2013
        $region122: #{tpu_custom_call.1} parent=91 // pred_check_branch
          %2016 = sbr.rel (%p2014) target = $region124
        $region123: #{tpu_custom_call.1} parent=91 // pred_region
          %v2017 = vpack.c.bf16 %v2011, %v2011
          %v2018 = vld [vmem:[%s17] sm:$0xf]
          %v2019 = vld [vmem:[%s17 + $0x4] sm:$0xf]
          %v2020 = vld [vmem:[%s17 + $0x8] sm:$0xf]
          %v2021 = vld [vmem:[%s17 + $0xc] sm:$0xf]
          %v2026 = vunpack.c.l.b16 %v2018
          %v2027 = vunpack.c.l.b16 %v2019
          %v2028 = vunpack.c.l.b16 %v2020
          %v2029 = vunpack.c.l.b16 %v2021
          %v2030 = vpack.c.b16 %v2027, %v2026
          %v2031 = vpack.c.b16 %v2029, %v2028
          %v2035 = vsel %vm975, %v2017, 0
          %2037 = vmatprep.subr.bf16.mxu0 0
          %2038 = vmatpush1.bf16.msra.mxu0 %v2030
          %2039 = vmatprep.subr.bf16.mxu0 0
          %2040 = vmatpush1.bf16.msra.mxu0 %v2031
          %2041 = vmatprep.subr.bf16.mxu0 0
          %2042 = vmatpush1.bf16.msra.mxu0 0
          %2043 = vmatprep.subr.bf16.mxu0 0
          %2044 = vmatpush1.bf16.msra.mxu0 0
          %2045 = vmatprep.subr.bf16.mxu0 0
          %2046 = vmatpush1.bf16.msra.mxu0 0
          %2047 = vmatprep.subr.bf16.mxu0 0
          %2048 = vmatpush1.bf16.msra.mxu0 0
          %2049 = vmatprep.subr.bf16.mxu0 0
          %2050 = vmatpush1.bf16.msra.mxu0 0
          %2051 = vmatprep.subr.bf16.mxu0 0
          %2052 = vmatpush1.bf16.msra.mxu0 0
          %2053 = vmatprep.subr.bf16.mxu0 0
          %2054 = vmatpush1.bf16.msra.mxu0 0
          %2055 = vmatprep.subr.bf16.mxu0 0
          %2056 = vmatpush1.bf16.msra.mxu0 0
          %2057 = vmatprep.subr.bf16.mxu0 0
          %2058 = vmatpush1.bf16.msra.mxu0 0
          %2059 = vmatprep.subr.bf16.mxu0 0
          %2060 = vmatpush1.bf16.msra.mxu0 0
          %2061 = vmatprep.subr.bf16.mxu0 0
          %2062 = vmatpush1.bf16.msra.mxu0 0
          %2063 = vmatprep.subr.bf16.mxu0 0
          %2064 = vmatpush1.bf16.msra.mxu0 0
          %2065 = vmatprep.subr.bf16.mxu0 0
          %2066 = vmatpush1.bf16.msra.mxu0 0
          %2067 = vmatprep.subr.bf16.mxu0 0
          %2068 = vmatpush1.bf16.msra.mxu0 0
          %2069 = vmatprep.mubr.bf16.mxu0 0
          %2070 = vmatmul.mubr.bf16.gmra.mrb[0].mxu0 %v2035
          %v2071 = vpop.f32.mrb[0].mxu0
          %v2072 = vadd.f32 0.0, %v2071
          %v2073 = vpop.f32.mrb[0].mxu0
          %v2074 = vpop.f32.mrb[0].mxu0
          %v2075 = vpop.f32.mrb[0].mxu0
          %2076 = vdwg.mxu0
          %v2077 = vld [vmem:[%s882] sm:$0xff]
          %2079 = vset.pattern.permute.xlu0 0
          %2080 = vperm.xlu0 %2079, %v2077
          %v2081 = vpop.permute.xlu0 %2080
          %v2083 = vmul.f32 %v2072, %v2081
          %v2084 = vrot.slane %v2083, 4
          %v2085 = vadd.f32 %v2083, %v2084
          %v2086 = vrot.slane %v2085, 2
          %v2087 = vadd.f32 %v2085, %v2086
          %v2088 = vrot.slane %v2087, 1
          %v2089 = vadd.f32 %v2087, %v2088
          %2090 = vst [vmem:[%s871] sm:$0x1] %v2089
        $region124: #{tpu_custom_call.1} parent=91 // pred_fallthru
          _
        %s2091 = sand.u32 %s515, 1
        %s2092 = scalar_lea.sflag [#allocation5], %s2091
        %s2093 = sand.u32 %s515, 1
        %s2094 = scalar_lea.vmem [#allocation14], %s2093
        // Predicated region
        $region125: #{tpu_custom_call.1} parent=91 // pred_check
          %p2095 = pneg %p525
        $region126: #{tpu_custom_call.1} parent=91 // pred_check_branch
          %2097 = sbr.rel (%p2095) target = $region128
        $region127: #{tpu_custom_call.1} parent=91 // pred_region
          %s2099 = ssub.s32 16, 16
          %2100 = vsyncadd %s2092, %s2099
          %s2101 = smul.addr %s46, 16
          %s2102 = scalar_lea.hbm %s18, %s2101
          %s2104 = sshll.u32 %s2094, 4
          %s2105 = int_to_ptr.vmem [resolvable:$true] %s2104
          %2107 = dma.vmem_to_hbm [thread:$0]  %s2105, 16, %s2102, %s2092
        $region128: #{tpu_custom_call.1} parent=91 // pred_fallthru
          _
      $region92: #{tpu_custom_call.1} parent=5 // pred_fallthru
        _
      %p2108 = scmp.le.s32.totalorder 2, %s37
      // Predicated region
      $region129: #{tpu_custom_call.1} parent=5 // pred_check
        %p2109 = pneg %p2108
      $region130: #{tpu_custom_call.1} parent=5 // pred_check_branch
        %2111 = sbr.rel (%p2109) target = $region132
      $region131: #{tpu_custom_call.1} parent=5 // pred_region
        %s2112 = ssub.s32 %s37, 2
        // Predicated region
        $region133: #{tpu_custom_call.1} parent=131 // pred_check
          %p2113 = pneg %p531
        $region134: #{tpu_custom_call.1} parent=131 // pred_check_branch
          %2115 = sbr.rel (%p2113) target = $region136
        $region135: #{tpu_custom_call.1} parent=131 // pred_region
          %s2116 = sand.u32 %s516, 1
          %s2117 = scalar_lea.sflag [#allocation5], %s2116
          %s2118 = sand.u32 %s516, 1
          %s2119 = scalar_lea.vmem [#allocation14], %s2118
          %2120 = dma.done %s2117, 16
        $region136: #{tpu_custom_call.1} parent=131 // pred_fallthru
          _
      $region132: #{tpu_custom_call.1} parent=5 // pred_fallthru
        _
    $region6: #{tpu_custom_call.1} parent=1 // loop_footer
      %s41 = sadd.s32 1, %s37
    $region7: #{tpu_custom_call.1} parent=1 // loop_footer_branch
      %36 = sbr.rel target = $region3
    $region8: #{tpu_custom_call.1} parent=1 // loop_exit
      _
    %2121 = vsyncpa [#allocation4], 1
    %s2122 = scalar_lea.sflag [#allocation4], 1
    %2123 = vsyncpa %s2122, 1
    %2124 = vsyncpa [#allocation7], 1
    %s2125 = scalar_lea.sflag [#allocation7], 1
    %2126 = vsyncpa %s2125, 1
    %2127 = vsyncpa [#allocation10], 1
    %s2128 = scalar_lea.sflag [#allocation10], 1
    %2129 = vsyncpa %s2128, 1
    %2130 = vsyncpa [#allocation13], 1
    %s2131 = scalar_lea.sflag [#allocation13], 1
    %2132 = vsyncpa %s2131, 1
    %2133 = vsyncpa [#allocation5], 1
    %s2134 = scalar_lea.sflag [#allocation5], 1
    %2135 = vsyncpa %s2134, 1

</llo_original>
